<compile_context>
chip_gen: v7x
topology: tpu7x:2x2x1
jax: 0.10.0
libtpu: 0.0.40
codegen_flags: <defaults>
</compile_context>

<pallas_src>
import functools
import math

import jax
import jax.numpy as jnp
from jax import lax
from jax.experimental import pallas as pl
from jax.experimental.pallas import tpu as pltpu

# Safe on every generation (v5e/v6e: 128 MiB physical; v7x: 64 MiB physical,
# 32 MiB scoped default).  Tiles below need ~5 MiB double-buffered.
_VMEM_LIMIT = 32 * 1024 * 1024


def _pick_tile(dim, desired):
    """Largest-usable tile: full dim if small or non-divisible, else `desired`."""
    if dim <= desired or dim % desired != 0:
        return dim
    return desired


# ------------------------------------------------------------------
# Tiled linear (+bias, optional exact GELU) — MXU kernel
# ------------------------------------------------------------------

def _linear_kernel(x_ref, w_ref, b_ref, o_ref, acc_ref, *, activation):
    k = pl.program_id(2)

    @pl.when(k == 0)
    def _():
        acc_ref[...] = jnp.zeros_like(acc_ref)

    # bf16 MXU inputs, f32 accumulation.
    acc_ref[...] += jnp.dot(x_ref[...].astype(jnp.bfloat16),
                            w_ref[...].astype(jnp.bfloat16),
                            preferred_element_type=jnp.float32)

    @pl.when(k == pl.num_programs(2) - 1)
    def _():
        y = acc_ref[...] + b_ref[...]
        if activation == "gelu":
            # exact (erf-based) GELU, matching BERT's "gelu"
            y = 0.5 * y * (1.0 + lax.erf(y * (1.0 / math.sqrt(2.0))))
        o_ref[...] = y


def linear(x2d, w, b, activation=None, *, tm=256, tn=512, tk=512):
    M, K = x2d.shape
    N = w.shape[1]
    tm = _pick_tile(M, tm)
    tn = _pick_tile(N, tn)
    tk = _pick_tile(K, tk)
    kernel = functools.partial(_linear_kernel, activation=activation)
    return pl.pallas_call(
        kernel,
        out_shape=jax.ShapeDtypeStruct((M, N), jnp.float32),
        grid=(M // tm, N // tn, K // tk),
        in_specs=[
            pl.BlockSpec((tm, tk), lambda i, j, k: (i, k)),
            pl.BlockSpec((tk, tn), lambda i, j, k: (k, j)),
            pl.BlockSpec((1, tn), lambda i, j, k: (0, j)),
        ],
        out_specs=pl.BlockSpec((tm, tn), lambda i, j, k: (i, j)),
        scratch_shapes=[pltpu.VMEM((tm, tn), jnp.float32)],
        compiler_params=pltpu.CompilerParams(
            dimension_semantics=("parallel", "parallel", "arbitrary"),
            vmem_limit_bytes=_VMEM_LIMIT),
    )(x2d, w, b.reshape(1, N))


# ------------------------------------------------------------------
# Tiled linear with fused residual-add + LayerNorm epilogue
# (output dim N is NOT tiled: LayerNorm reduces over it)
# ------------------------------------------------------------------

def _linear_res_ln_kernel(x_ref, w_ref, b_ref, r_ref, g_ref, beta_ref, o_ref,
                          acc_ref, *, eps):
    k = pl.program_id(1)

    @pl.when(k == 0)
    def _():
        acc_ref[...] = jnp.zeros_like(acc_ref)

    acc_ref[...] += jnp.dot(x_ref[...].astype(jnp.bfloat16),
                            w_ref[...].astype(jnp.bfloat16),
                            preferred_element_type=jnp.float32)

    # Epilogue (bias + residual + LayerNorm) only on the final K step.
    @pl.when(k == pl.num_programs(1) - 1)
    def _():
        y = acc_ref[...] + b_ref[...] + r_ref[...]
        mean = jnp.mean(y, axis=-1, keepdims=True)
        var = jnp.mean((y - mean) ** 2, axis=-1, keepdims=True)
        yn = (y - mean) * lax.rsqrt(var + eps)
        o_ref[...] = yn * g_ref[...] + beta_ref[...]


def linear_residual_layernorm(x2d, w, b, res2d, gamma, beta, *,
                              eps=1e-12, tm=256, tk=512):
    M, K = x2d.shape
    N = w.shape[1]
    tm = _pick_tile(M, tm)
    tk = _pick_tile(K, tk)
    kernel = functools.partial(_linear_res_ln_kernel, eps=eps)
    return pl.pallas_call(
        kernel,
        out_shape=jax.ShapeDtypeStruct((M, N), jnp.float32),
        grid=(M // tm, K // tk),
        in_specs=[
            pl.BlockSpec((tm, tk), lambda i, k: (i, k)),
            pl.BlockSpec((tk, N), lambda i, k: (k, 0)),
            pl.BlockSpec((1, N), lambda i, k: (0, 0)),
            pl.BlockSpec((tm, N), lambda i, k: (i, 0)),
            pl.BlockSpec((1, N), lambda i, k: (0, 0)),
            pl.BlockSpec((1, N), lambda i, k: (0, 0)),
        ],
        out_specs=pl.BlockSpec((tm, N), lambda i, k: (i, 0)),
        scratch_shapes=[pltpu.VMEM((tm, N), jnp.float32)],
        compiler_params=pltpu.CompilerParams(
            dimension_semantics=("parallel", "arbitrary"),
            vmem_limit_bytes=_VMEM_LIMIT),
    )(x2d, w, b.reshape(1, N), res2d, gamma.reshape(1, N), beta.reshape(1, N))


# ------------------------------------------------------------------
# Row-tiled residual-add + LayerNorm (used for the embedding sum)
# ------------------------------------------------------------------

def _add_ln_kernel(x_ref, r_ref, g_ref, b_ref, o_ref, *, eps):
    x = x_ref[...] + r_ref[...]
    mean = jnp.mean(x, axis=-1, keepdims=True)
    var = jnp.mean((x - mean) ** 2, axis=-1, keepdims=True)
    o_ref[...] = (x - mean) * lax.rsqrt(var + eps) * g_ref[...] + b_ref[...]


def add_layernorm(x2d, res2d, gamma, beta, eps=1e-12, *, tm=512):
    M, H = x2d.shape
    tm = _pick_tile(M, tm)
    kernel = functools.partial(_add_ln_kernel, eps=eps)
    return pl.pallas_call(
        kernel,
        out_shape=jax.ShapeDtypeStruct((M, H), jnp.float32),
        grid=(M // tm,),
        in_specs=[
            pl.BlockSpec((tm, H), lambda i: (i, 0)),
            pl.BlockSpec((tm, H), lambda i: (i, 0)),
            pl.BlockSpec((1, H), lambda i: (0, 0)),
            pl.BlockSpec((1, H), lambda i: (0, 0)),
        ],
        out_specs=pl.BlockSpec((tm, H), lambda i: (i, 0)),
        compiler_params=pltpu.CompilerParams(
            dimension_semantics=("parallel",),
            vmem_limit_bytes=_VMEM_LIMIT),
    )(x2d, res2d, gamma.reshape(1, H), beta.reshape(1, H))


# ------------------------------------------------------------------
# Attention: all heads of one batch element per grid step,
# reading the packed QKV block and slicing heads in-kernel.
# ------------------------------------------------------------------

def _attention_kernel(qkv_ref, m_ref, o_ref, *, num_heads, head_dim, scale):
    qkv = qkv_ref[0]                       # (S, 3H) packed [Q | K | V]
    m = m_ref[0]                           # (1, S) additive mask
    H = num_heads * head_dim
    outs = []
    for h in range(num_heads):             # unrolled; heads share the DMA'd block
        lo = h * head_dim
        q = qkv[:, lo:lo + head_dim]
        k = qkv[:, H + lo:H + lo + head_dim]
        v = qkv[:, 2 * H + lo:2 * H + lo + head_dim]
        s = jnp.dot(q.astype(jnp.bfloat16), k.astype(jnp.bfloat16).T,
                    preferred_element_type=jnp.float32) * scale + m
        s = s - jnp.max(s, axis=-1, keepdims=True)
        p = jnp.exp(s)
        p = p * pl.reciprocal(jnp.sum(p, axis=-1, keepdims=True), approx=True)
        outs.append(jnp.dot(p.astype(jnp.bfloat16), v.astype(jnp.bfloat16),
                            preferred_element_type=jnp.float32))
    # single lane-dense store of the merged-head context
    o_ref[0] = jnp.concatenate(outs, axis=-1)


def attention(qkv_3d, addmask, num_heads, head_dim):
    B, S, threeH = qkv_3d.shape
    H = num_heads * head_dim
    kernel = functools.partial(_attention_kernel, num_heads=num_heads,
                               head_dim=head_dim, scale=1.0 / math.sqrt(head_dim))
    return pl.pallas_call(
        kernel,
        out_shape=jax.ShapeDtypeStruct((B, S, H), jnp.float32),
        grid=(B,),
        in_specs=[
            pl.BlockSpec((1, S, threeH), lambda b: (b, 0, 0)),
            pl.BlockSpec((1, 1, S), lambda b: (b, 0, 0)),
        ],
        out_specs=pl.BlockSpec((1, S, H), lambda b: (b, 0, 0)),
        compiler_params=pltpu.CompilerParams(
            dimension_semantics=("parallel",),
            vmem_limit_bytes=_VMEM_LIMIT),
    )(qkv_3d, addmask)


# ------------------------------------------------------------------
# Model (parameters + forward)
# ------------------------------------------------------------------

CFG = dict(vocab_size=64, hidden=32, num_heads=4, num_layers=2,
           intermediate=64, max_pos=16, type_vocab=2)


def init_params(key, cfg):
    H, I = cfg["hidden"], cfg["intermediate"]
    ks = jax.random.split(key, 3 + 4 * cfg["num_layers"])
    std = 0.02

    def w(k, shape):
        return (std * jax.random.normal(k, shape)).astype(jnp.float32)

    params = {
        "word_emb": w(ks[0], (cfg["vocab_size"], H)),
        "pos_emb": w(ks[1], (cfg["max_pos"], H)),
        "type_emb": w(ks[2], (cfg["type_vocab"], H)),
        "emb_ln_g": jnp.ones((H,), jnp.float32),
        "emb_ln_b": jnp.zeros((H,), jnp.float32),
        "layers": [],
    }
    for l in range(cfg["num_layers"]):
        kk = ks[3 + 4 * l: 3 + 4 * (l + 1)]
        params["layers"].append({
            # fused Q|K|V projection: single [H, 3H] matmul
            "wqkv": w(kk[0], (H, 3 * H)), "bqkv": jnp.zeros((3 * H,), jnp.float32),
            "wo": w(kk[1], (H, H)), "bo": jnp.zeros((H,), jnp.float32),
            "ln1_g": jnp.ones((H,), jnp.float32), "ln1_b": jnp.zeros((H,), jnp.float32),
            "wi": w(kk[2], (H, I)), "bi": jnp.zeros((I,), jnp.float32),
            "wo2": w(kk[3], (I, H)), "bo2": jnp.zeros((H,), jnp.float32),
            "ln2_g": jnp.ones((H,), jnp.float32), "ln2_b": jnp.zeros((H,), jnp.float32),
        })
    return params


def encoder_layer(h2d, p, addmask, B, S, nH, dh, H):
    # fused QKV projection: one tiled matmul, [B*S, 3H]
    qkv2d = linear(h2d, p["wqkv"], p["bqkv"])
    # attention over all heads of each batch element (head slicing inside kernel)
    ctx = attention(qkv2d.reshape(B, S, 3 * H), addmask, nH, dh)     # [B, S, H]
    # output projection fused with residual + LayerNorm
    h2d = linear_residual_layernorm(ctx.reshape(B * S, H), p["wo"], p["bo"],
                                    h2d, p["ln1_g"], p["ln1_b"])
    # FFN: GELU linear, then output projection fused with residual + LayerNorm
    inter = linear(h2d, p["wi"], p["bi"], activation="gelu")
    h2d = linear_residual_layernorm(inter, p["wo2"], p["bo2"],
                                    h2d, p["ln2_g"], p["ln2_b"])
    return h2d


def contextualized_embedding(params, input_ids, attention_mask, token_type_ids=None,
                             cfg=CFG):
    B, S = input_ids.shape
    H, nH = cfg["hidden"], cfg["num_heads"]
    dh = H // nH
    if token_type_ids is None:
        token_type_ids = jnp.zeros_like(input_ids)
    position_ids = jnp.broadcast_to(jnp.arange(S, dtype=jnp.int32)[None, :], (B, S))
    # extended attention mask: (1 - mask) * -10000, broadcast over heads & queries
    ext_mask = (1.0 - attention_mask.astype(jnp.float32)) * -10000.0   # [B, S]
    addmask = ext_mask[:, None, :]                                     # [B, 1, S]

    # embeddings: gathers (glue) + fused sum/LayerNorm (row-tiled kernel)
    we = jnp.take(params["word_emb"], input_ids, axis=0)
    pe = jnp.take(params["pos_emb"], position_ids, axis=0)
    te = jnp.take(params["type_emb"], token_type_ids, axis=0)
    h2d = add_layernorm((we + pe).reshape(B * S, H), te.reshape(B * S, H),
                        params["emb_ln_g"], params["emb_ln_b"])

    for p in params["layers"]:
        h2d = encoder_layer(h2d, p, addmask, B, S, nH, dh, H)
    return h2d.reshape(B, S, H)


# ------------------------------------------------------------------
# Pure-JAX reference.  Mirrors the kernels' mixed precision (bf16 MXU
# inputs, f32 accumulation) so the comparison checks kernel structure,
# tiling and fusion rather than bf16 rounding.
# ------------------------------------------------------------------

def _mm(a, b):
    return jnp.dot(a.astype(jnp.bfloat16), b.astype(jnp.bfloat16),
                   preferred_element_type=jnp.float32)


def _ref_ln(x, g, b, eps=1e-12):
    m = jnp.mean(x, axis=-1, keepdims=True)
    v = jnp.mean((x - m) ** 2, axis=-1, keepdims=True)
    return (x - m) / jnp.sqrt(v + eps) * g + b


def reference(params, input_ids, attention_mask, token_type_ids=None, cfg=CFG):
    B, S = input_ids.shape
    H, nH = cfg["hidden"], cfg["num_heads"]
    dh = H // nH
    if token_type_ids is None:
        token_type_ids = jnp.zeros_like(input_ids)
    pos = jnp.broadcast_to(jnp.arange(S, dtype=jnp.int32)[None, :], (B, S))
    ext = (1.0 - attention_mask.astype(jnp.float32)) * -10000.0
    x = (jnp.take(params["word_emb"], input_ids, axis=0)
         + jnp.take(params["pos_emb"], pos, axis=0)
         + jnp.take(params["type_emb"], token_type_ids, axis=0))
    h = _ref_ln(x, params["emb_ln_g"], params["emb_ln_b"])
    for p in params["layers"]:
        qkv = _mm(h, p["wqkv"]) + p["bqkv"]            # [B, S, 3H]
        q, k, v = jnp.split(qkv, 3, axis=-1)

        def heads(z):
            return z.reshape(B, S, nH, dh).transpose(0, 2, 1, 3)

        q, k, v = heads(q), heads(k), heads(v)
        s = jnp.einsum("bhqd,bhkd->bhqk",
                       q.astype(jnp.bfloat16), k.astype(jnp.bfloat16),
                       preferred_element_type=jnp.float32)
        s = s * (1.0 / math.sqrt(dh)) + ext[:, None, None, :]
        a = jax.nn.softmax(s, axis=-1)
        ctx = jnp.einsum("bhqk,bhkd->bhqd",
                         a.astype(jnp.bfloat16), v.astype(jnp.bfloat16),
                         preferred_element_type=jnp.float32)
        ctx = ctx.transpose(0, 2, 1, 3).reshape(B, S, H)
        h = _ref_ln(_mm(ctx, p["wo"]) + p["bo"] + h, p["ln1_g"], p["ln1_b"])
        i = _mm(h, p["wi"]) + p["bi"]
        i = 0.5 * i * (1.0 + lax.erf(i * (1.0 / math.sqrt(2.0))))
        h = _ref_ln(_mm(i, p["wo2"]) + p["bo2"] + h, p["ln2_g"], p["ln2_b"])
    return h


# ------------------------------------------------------------------

if __name__ == "__main__":
    B, S = 2, 8
    key = jax.random.PRNGKey(0)
    k_param, k_ids, k_type = jax.random.split(key, 3)

    params = init_params(k_param, CFG)
    input_ids = jax.random.randint(k_ids, (B, S), 0, CFG["vocab_size"], dtype=jnp.int32)
    token_type_ids = jax.random.randint(k_type, (B, S), 0, CFG["type_vocab"],
                                        dtype=jnp.int32)
    # lengths 8 and 5 -> padded positions masked out
    attention_mask = jnp.array([[1, 1, 1, 1, 1, 1, 1, 1],
                                [1, 1, 1, 1, 1, 0, 0, 0]], dtype=jnp.int32)

    fwd = jax.jit(lambda p, ids, mask, tt: contextualized_embedding(p, ids, mask, tt))
    out = fwd(params, input_ids, attention_mask, token_type_ids)
    out = jax.block_until_ready(out)

    ref = reference(params, input_ids, attention_mask, token_type_ids)
    assert out.shape == (B, S, CFG["hidden"])
    assert jnp.allclose(out, ref, atol=5e-3, rtol=5e-3), "mismatch vs reference"

    print("KERNEL_OK")
</pallas_src>

<mosaic_0001>
module attributes {stable_mosaic.version = 11 : i64} {
  func.func @_add_ln_kernel(%arg0: i32, %arg1: memref<16x32xf32, #tpu.memory_space<vmem>>, %arg2: memref<16x32xf32, #tpu.memory_space<vmem>>, %arg3: memref<1x32xf32, #tpu.memory_space<vmem>>, %arg4: memref<1x32xf32, #tpu.memory_space<vmem>>, %arg5: memref<16x32xf32, #tpu.memory_space<vmem>>) attributes {dimension_semantics = [#tpu.dimension_semantics<parallel>], iteration_bounds = array<i64: 1>, scalar_prefetch = 0 : i64, scratch_operands = 0 : i64, tpu.core_type = #tpu.core_type<tc>, window_params = [{transform_indices = @transform_0, window_bounds = array<i64: 16, 32>}, {transform_indices = @transform_1, window_bounds = array<i64: 16, 32>}, {pipeline_mode = #tpu.pipeline_mode<synchronous>, transform_indices = @transform_2, window_bounds = array<i64: 1, 32>}, {pipeline_mode = #tpu.pipeline_mode<synchronous>, transform_indices = @transform_3, window_bounds = array<i64: 1, 32>}, {transform_indices = @transform_4, window_bounds = array<i64: 16, 32>}]} {
    %c0 = arith.constant 0 : index
    %c0_0 = arith.constant 0 : index
    %0 = vector.load %arg1[%c0, %c0_0] : memref<16x32xf32, #tpu.memory_space<vmem>>, vector<16x32xf32>
    %c0_1 = arith.constant 0 : index
    %c0_2 = arith.constant 0 : index
    %1 = vector.load %arg2[%c0_1, %c0_2] : memref<16x32xf32, #tpu.memory_space<vmem>>, vector<16x32xf32>
    %2 = arith.addf %0, %1 : vector<16x32xf32>
    %cst = arith.constant dense<0.000000e+00> : vector<16xf32>
    %3 = vector.multi_reduction <add>, %2, %cst [1] : vector<16x32xf32> to vector<16xf32>
    %4 = vector.shape_cast %3 : vector<16xf32> to vector<16x1xf32>
    %cst_3 = arith.constant 3.200000e+01 : f32
    %5 = vector.broadcast %cst_3 : f32 to vector<16x1xf32>
    %6 = arith.divf %4, %5 : vector<16x1xf32>
    %7 = vector.broadcast %6 : vector<16x1xf32> to vector<16x32xf32>
    %8 = arith.subf %2, %7 : vector<16x32xf32>
    %9 = arith.mulf %8, %8 : vector<16x32xf32>
    %cst_4 = arith.constant dense<0.000000e+00> : vector<16xf32>
    %10 = vector.multi_reduction <add>, %9, %cst_4 [1] : vector<16x32xf32> to vector<16xf32>
    %11 = vector.shape_cast %10 : vector<16xf32> to vector<16x1xf32>
    %cst_5 = arith.constant 3.200000e+01 : f32
    %12 = vector.broadcast %cst_5 : f32 to vector<16x1xf32>
    %13 = arith.divf %11, %12 : vector<16x1xf32>
    %14 = vector.broadcast %6 : vector<16x1xf32> to vector<16x32xf32>
    %15 = arith.subf %2, %14 : vector<16x32xf32>
    %cst_6 = arith.constant 9.99999996E-13 : f32
    %16 = vector.broadcast %cst_6 : f32 to vector<16x1xf32>
    %17 = arith.addf %13, %16 : vector<16x1xf32>
    %18 = math.rsqrt %17 : vector<16x1xf32>
    %19 = vector.broadcast %18 : vector<16x1xf32> to vector<16x32xf32>
    %20 = arith.mulf %15, %19 : vector<16x32xf32>
    %c0_7 = arith.constant 0 : index
    %c0_8 = arith.constant 0 : index
    %21 = vector.load %arg3[%c0_7, %c0_8] : memref<1x32xf32, #tpu.memory_space<vmem>>, vector<1x32xf32>
    %22 = vector.broadcast %21 : vector<1x32xf32> to vector<16x32xf32>
    %23 = arith.mulf %20, %22 : vector<16x32xf32>
    %c0_9 = arith.constant 0 : index
    %c0_10 = arith.constant 0 : index
    %24 = vector.load %arg4[%c0_9, %c0_10] : memref<1x32xf32, #tpu.memory_space<vmem>>, vector<1x32xf32>
    %25 = vector.broadcast %24 : vector<1x32xf32> to vector<16x32xf32>
    %26 = arith.addf %23, %25 : vector<16x32xf32>
    %c0_11 = arith.constant 0 : index
    %c0_12 = arith.constant 0 : index
    %27 = vector.load %arg5[%c0_11, %c0_12] : memref<16x32xf32, #tpu.memory_space<vmem>>, vector<16x32xf32>
    tpu.vector_store %arg5[%c0_11, %c0_12], %26 {strides = array<i32>} : memref<16x32xf32, #tpu.memory_space<vmem>>, vector<16x32xf32>,
    return
  }
  func.func @transform_0(%arg0: i32) -> (i32, i32) {
    %c0_i32 = arith.constant 0 : i32
    %c0_i32_0 = arith.constant 0 : i32
    return %arg0, %c0_i32 : i32, i32
  }
  func.func @transform_1(%arg0: i32) -> (i32, i32) {
    %c0_i32 = arith.constant 0 : i32
    %c0_i32_0 = arith.constant 0 : i32
    return %arg0, %c0_i32 : i32, i32
  }
  func.func @transform_2(%arg0: i32) -> (i32, i32) {
    %c0_i32 = arith.constant 0 : i32
    %c0_i32_0 = arith.constant 0 : i32
    %c0_i32_1 = arith.constant 0 : i32
    return %c0_i32, %c0_i32_0 : i32, i32
  }
  func.func @transform_3(%arg0: i32) -> (i32, i32) {
    %c0_i32 = arith.constant 0 : i32
    %c0_i32_0 = arith.constant 0 : i32
    %c0_i32_1 = arith.constant 0 : i32
    return %c0_i32, %c0_i32_0 : i32, i32
  }
  func.func @transform_4(%arg0: i32) -> (i32, i32) {
    %c0_i32 = arith.constant 0 : i32
    %c0_i32_0 = arith.constant 0 : i32
    return %arg0, %c0_i32 : i32, i32
  }
}

module attributes {stable_mosaic.version = 11 : i64} {
  func.func @_attention_kernel(%arg0: i32, %arg1: memref<1x8x96xf32, #tpu.memory_space<vmem>>, %arg2: memref<1x1x8xf32, #tpu.memory_space<vmem>>, %arg3: memref<1x8x32xf32, #tpu.memory_space<vmem>>) attributes {dimension_semantics = [#tpu.dimension_semantics<parallel>], iteration_bounds = array<i64: 2>, scalar_prefetch = 0 : i64, scratch_operands = 0 : i64, tpu.core_type = #tpu.core_type<tc>, window_params = [{transform_indices = @transform_0, window_bounds = array<i64: 1, 8, 96>}, {transform_indices = @transform_1, window_bounds = array<i64: 1, 1, 8>}, {transform_indices = @transform_2, window_bounds = array<i64: 1, 8, 32>}]} {
    %c0 = arith.constant 0 : index
    %c0_0 = arith.constant 0 : index
    %c0_1 = arith.constant 0 : index
    %0 = vector.load %arg1[%c0, %c0_0, %c0_1] : memref<1x8x96xf32, #tpu.memory_space<vmem>>, vector<1x8x96xf32>
    %1 = vector.shape_cast %0 : vector<1x8x96xf32> to vector<8x96xf32>
    %c0_2 = arith.constant 0 : index
    %c0_3 = arith.constant 0 : index
    %c0_4 = arith.constant 0 : index
    %2 = vector.load %arg2[%c0_2, %c0_3, %c0_4] : memref<1x1x8xf32, #tpu.memory_space<vmem>>, vector<1x1x8xf32>
    %3 = vector.shape_cast %2 : vector<1x1x8xf32> to vector<1x8xf32>
    %4 = vector.extract_strided_slice %1 {offsets = [0, 0], sizes = [8, 8], strides = [1, 1]} : vector<8x96xf32> to vector<8x8xf32>
    %5 = vector.extract_strided_slice %1 {offsets = [0, 32], sizes = [8, 8], strides = [1, 1]} : vector<8x96xf32> to vector<8x8xf32>
    %6 = vector.extract_strided_slice %1 {offsets = [0, 64], sizes = [8, 8], strides = [1, 1]} : vector<8x96xf32> to vector<8x8xf32>
    %7 = arith.truncf %4 : vector<8x8xf32> to vector<8x8xbf16>
    %8 = arith.truncf %5 : vector<8x8xf32> to vector<8x8xbf16>
    %9 = tpu.transpose %8, [1, 0] : vector<8x8xbf16> -> vector<8x8xbf16>
    %cst = arith.constant dense<0.000000e+00> : vector<8x8xf32>
    %10 = tpu.matmul %7, %9, %cst {dimension_numbers = #tpu.dot_dimension_numbers<[1], [0], [0], [1], [0, 0, 1, 1], [], []>} : vector<8x8xbf16>, vector<8x8xbf16>, vector<8x8xf32> -> vector<8x8xf32>
    %cst_5 = arith.constant 0.353553385 : f32
    %11 = vector.broadcast %cst_5 : f32 to vector<8x8xf32>
    %12 = arith.mulf %10, %11 : vector<8x8xf32>
    %13 = vector.broadcast %3 : vector<1x8xf32> to vector<8x8xf32>
    %14 = arith.addf %12, %13 : vector<8x8xf32>
    %cst_6 = arith.constant dense<0xFF800000> : vector<8xf32>
    %15 = vector.multi_reduction <maximumf>, %14, %cst_6 [1] : vector<8x8xf32> to vector<8xf32>
    %16 = vector.shape_cast %15 : vector<8xf32> to vector<8x1xf32>
    %17 = vector.broadcast %16 : vector<8x1xf32> to vector<8x8xf32>
    %18 = arith.subf %14, %17 : vector<8x8xf32>
    %19 = math.exp %18 : vector<8x8xf32>
    %cst_7 = arith.constant dense<0.000000e+00> : vector<8xf32>
    %20 = vector.multi_reduction <add>, %19, %cst_7 [1] : vector<8x8xf32> to vector<8xf32>
    %21 = vector.shape_cast %20 : vector<8xf32> to vector<8x1xf32>
    %22 = tpu.reciprocal %21 {approx = true} : vector<8x1xf32> -> vector<8x1xf32>
    %23 = vector.broadcast %22 : vector<8x1xf32> to vector<8x8xf32>
    %24 = arith.mulf %19, %23 : vector<8x8xf32>
    %25 = arith.truncf %24 : vector<8x8xf32> to vector<8x8xbf16>
    %26 = arith.truncf %6 : vector<8x8xf32> to vector<8x8xbf16>
    %cst_8 = arith.constant dense<0.000000e+00> : vector<8x8xf32>
    %27 = tpu.matmul %25, %26, %cst_8 {dimension_numbers = #tpu.dot_dimension_numbers<[1], [0], [0], [1], [0, 0, 1, 1], [], []>} : vector<8x8xbf16>, vector<8x8xbf16>, vector<8x8xf32> -> vector<8x8xf32>
    %28 = vector.extract_strided_slice %1 {offsets = [0, 8], sizes = [8, 8], strides = [1, 1]} : vector<8x96xf32> to vector<8x8xf32>
    %29 = vector.extract_strided_slice %1 {offsets = [0, 40], sizes = [8, 8], strides = [1, 1]} : vector<8x96xf32> to vector<8x8xf32>
    %30 = vector.extract_strided_slice %1 {offsets = [0, 72], sizes = [8, 8], strides = [1, 1]} : vector<8x96xf32> to vector<8x8xf32>
    %31 = arith.truncf %28 : vector<8x8xf32> to vector<8x8xbf16>
    %32 = arith.truncf %29 : vector<8x8xf32> to vector<8x8xbf16>
    %33 = tpu.transpose %32, [1, 0] : vector<8x8xbf16> -> vector<8x8xbf16>
    %cst_9 = arith.constant dense<0.000000e+00> : vector<8x8xf32>
    %34 = tpu.matmul %31, %33, %cst_9 {dimension_numbers = #tpu.dot_dimension_numbers<[1], [0], [0], [1], [0, 0, 1, 1], [], []>} : vector<8x8xbf16>, vector<8x8xbf16>, vector<8x8xf32> -> vector<8x8xf32>
    %cst_10 = arith.constant 0.353553385 : f32
    %35 = vector.broadcast %cst_10 : f32 to vector<8x8xf32>
    %36 = arith.mulf %34, %35 : vector<8x8xf32>
    %37 = vector.broadcast %3 : vector<1x8xf32> to vector<8x8xf32>
    %38 = arith.addf %36, %37 : vector<8x8xf32>
    %cst_11 = arith.constant dense<0xFF800000> : vector<8xf32>
    %39 = vector.multi_reduction <maximumf>, %38, %cst_11 [1] : vector<8x8xf32> to vector<8xf32>
    %40 = vector.shape_cast %39 : vector<8xf32> to vector<8x1xf32>
    %41 = vector.broadcast %40 : vector<8x1xf32> to vector<8x8xf32>
    %42 = arith.subf %38, %41 : vector<8x8xf32>
    %43 = math.exp %42 : vector<8x8xf32>
    %cst_12 = arith.constant dense<0.000000e+00> : vector<8xf32>
    %44 = vector.multi_reduction <add>, %43, %cst_12 [1] : vector<8x8xf32> to vector<8xf32>
    %45 = vector.shape_cast %44 : vector<8xf32> to vector<8x1xf32>
    %46 = tpu.reciprocal %45 {approx = true} : vector<8x1xf32> -> vector<8x1xf32>
    %47 = vector.broadcast %46 : vector<8x1xf32> to vector<8x8xf32>
    %48 = arith.mulf %43, %47 : vector<8x8xf32>
    %49 = arith.truncf %48 : vector<8x8xf32> to vector<8x8xbf16>
    %50 = arith.truncf %30 : vector<8x8xf32> to vector<8x8xbf16>
    %cst_13 = arith.constant dense<0.000000e+00> : vector<8x8xf32>
    %51 = tpu.matmul %49, %50, %cst_13 {dimension_numbers = #tpu.dot_dimension_numbers<[1], [0], [0], [1], [0, 0, 1, 1], [], []>} : vector<8x8xbf16>, vector<8x8xbf16>, vector<8x8xf32> -> vector<8x8xf32>
    %52 = vector.extract_strided_slice %1 {offsets = [0, 16], sizes = [8, 8], strides = [1, 1]} : vector<8x96xf32> to vector<8x8xf32>
    %53 = vector.extract_strided_slice %1 {offsets = [0, 48], sizes = [8, 8], strides = [1, 1]} : vector<8x96xf32> to vector<8x8xf32>
    %54 = vector.extract_strided_slice %1 {offsets = [0, 80], sizes = [8, 8], strides = [1, 1]} : vector<8x96xf32> to vector<8x8xf32>
    %55 = arith.truncf %52 : vector<8x8xf32> to vector<8x8xbf16>
    %56 = arith.truncf %53 : vector<8x8xf32> to vector<8x8xbf16>
    %57 = tpu.transpose %56, [1, 0] : vector<8x8xbf16> -> vector<8x8xbf16>
    %cst_14 = arith.constant dense<0.000000e+00> : vector<8x8xf32>
    %58 = tpu.matmul %55, %57, %cst_14 {dimension_numbers = #tpu.dot_dimension_numbers<[1], [0], [0], [1], [0, 0, 1, 1], [], []>} : vector<8x8xbf16>, vector<8x8xbf16>, vector<8x8xf32> -> vector<8x8xf32>
    %cst_15 = arith.constant 0.353553385 : f32
    %59 = vector.broadcast %cst_15 : f32 to vector<8x8xf32>
    %60 = arith.mulf %58, %59 : vector<8x8xf32>
    %61 = vector.broadcast %3 : vector<1x8xf32> to vector<8x8xf32>
    %62 = arith.addf %60, %61 : vector<8x8xf32>
    %cst_16 = arith.constant dense<0xFF800000> : vector<8xf32>
    %63 = vector.multi_reduction <maximumf>, %62, %cst_16 [1] : vector<8x8xf32> to vector<8xf32>
    %64 = vector.shape_cast %63 : vector<8xf32> to vector<8x1xf32>
    %65 = vector.broadcast %64 : vector<8x1xf32> to vector<8x8xf32>
    %66 = arith.subf %62, %65 : vector<8x8xf32>
    %67 = math.exp %66 : vector<8x8xf32>
    %cst_17 = arith.constant dense<0.000000e+00> : vector<8xf32>
    %68 = vector.multi_reduction <add>, %67, %cst_17 [1] : vector<8x8xf32> to vector<8xf32>
    %69 = vector.shape_cast %68 : vector<8xf32> to vector<8x1xf32>
    %70 = tpu.reciprocal %69 {approx = true} : vector<8x1xf32> -> vector<8x1xf32>
    %71 = vector.broadcast %70 : vector<8x1xf32> to vector<8x8xf32>
    %72 = arith.mulf %67, %71 : vector<8x8xf32>
    %73 = arith.truncf %72 : vector<8x8xf32> to vector<8x8xbf16>
    %74 = arith.truncf %54 : vector<8x8xf32> to vector<8x8xbf16>
    %cst_18 = arith.constant dense<0.000000e+00> : vector<8x8xf32>
    %75 = tpu.matmul %73, %74, %cst_18 {dimension_numbers = #tpu.dot_dimension_numbers<[1], [0], [0], [1], [0, 0, 1, 1], [], []>} : vector<8x8xbf16>, vector<8x8xbf16>, vector<8x8xf32> -> vector<8x8xf32>
    %76 = vector.extract_strided_slice %1 {offsets = [0, 24], sizes = [8, 8], strides = [1, 1]} : vector<8x96xf32> to vector<8x8xf32>
    %77 = vector.extract_strided_slice %1 {offsets = [0, 56], sizes = [8, 8], strides = [1, 1]} : vector<8x96xf32> to vector<8x8xf32>
    %78 = vector.extract_strided_slice %1 {offsets = [0, 88], sizes = [8, 8], strides = [1, 1]} : vector<8x96xf32> to vector<8x8xf32>
    %79 = arith.truncf %76 : vector<8x8xf32> to vector<8x8xbf16>
    %80 = arith.truncf %77 : vector<8x8xf32> to vector<8x8xbf16>
    %81 = tpu.transpose %80, [1, 0] : vector<8x8xbf16> -> vector<8x8xbf16>
    %cst_19 = arith.constant dense<0.000000e+00> : vector<8x8xf32>
    %82 = tpu.matmul %79, %81, %cst_19 {dimension_numbers = #tpu.dot_dimension_numbers<[1], [0], [0], [1], [0, 0, 1, 1], [], []>} : vector<8x8xbf16>, vector<8x8xbf16>, vector<8x8xf32> -> vector<8x8xf32>
    %cst_20 = arith.constant 0.353553385 : f32
    %83 = vector.broadcast %cst_20 : f32 to vector<8x8xf32>
    %84 = arith.mulf %82, %83 : vector<8x8xf32>
    %85 = vector.broadcast %3 : vector<1x8xf32> to vector<8x8xf32>
    %86 = arith.addf %84, %85 : vector<8x8xf32>
    %cst_21 = arith.constant dense<0xFF800000> : vector<8xf32>
    %87 = vector.multi_reduction <maximumf>, %86, %cst_21 [1] : vector<8x8xf32> to vector<8xf32>
    %88 = vector.shape_cast %87 : vector<8xf32> to vector<8x1xf32>
    %89 = vector.broadcast %88 : vector<8x1xf32> to vector<8x8xf32>
    %90 = arith.subf %86, %89 : vector<8x8xf32>
    %91 = math.exp %90 : vector<8x8xf32>
    %cst_22 = arith.constant dense<0.000000e+00> : vector<8xf32>
    %92 = vector.multi_reduction <add>, %91, %cst_22 [1] : vector<8x8xf32> to vector<8xf32>
    %93 = vector.shape_cast %92 : vector<8xf32> to vector<8x1xf32>
    %94 = tpu.reciprocal %93 {approx = true} : vector<8x1xf32> -> vector<8x1xf32>
    %95 = vector.broadcast %94 : vector<8x1xf32> to vector<8x8xf32>
    %96 = arith.mulf %91, %95 : vector<8x8xf32>
    %97 = arith.truncf %96 : vector<8x8xf32> to vector<8x8xbf16>
    %98 = arith.truncf %78 : vector<8x8xf32> to vector<8x8xbf16>
    %cst_23 = arith.constant dense<0.000000e+00> : vector<8x8xf32>
    %99 = tpu.matmul %97, %98, %cst_23 {dimension_numbers = #tpu.dot_dimension_numbers<[1], [0], [0], [1], [0, 0, 1, 1], [], []>} : vector<8x8xbf16>, vector<8x8xbf16>, vector<8x8xf32> -> vector<8x8xf32>
    %100 = tpu.concatenate %27, %51, %75, %99 in 1 : vector<8x8xf32>, vector<8x8xf32>, vector<8x8xf32>, vector<8x8xf32> -> vector<8x32xf32>
    %c0_24 = arith.constant 0 : index
    %c0_25 = arith.constant 0 : index
    %c0_26 = arith.constant 0 : index
    %101 = vector.load %arg3[%c0_24, %c0_25, %c0_26] : memref<1x8x32xf32, #tpu.memory_space<vmem>>, vector<1x8x32xf32>
    %102 = vector.shape_cast %101 : vector<1x8x32xf32> to vector<8x32xf32>
    %103 = vector.shape_cast %100 : vector<8x32xf32> to vector<1x8x32xf32>
    tpu.vector_store %arg3[%c0_24, %c0_25, %c0_26], %103 {strides = array<i32>} : memref<1x8x32xf32, #tpu.memory_space<vmem>>, vector<1x8x32xf32>,
    return
  }
  func.func @transform_0(%arg0: i32) -> (i32, i32, i32) {
    %c0_i32 = arith.constant 0 : i32
    %c0_i32_0 = arith.constant 0 : i32
    %c0_i32_1 = arith.constant 0 : i32
    return %arg0, %c0_i32, %c0_i32_0 : i32, i32, i32
  }
  func.func @transform_1(%arg0: i32) -> (i32, i32, i32) {
    %c0_i32 = arith.constant 0 : i32
    %c0_i32_0 = arith.constant 0 : i32
    %c0_i32_1 = arith.constant 0 : i32
    return %arg0, %c0_i32, %c0_i32_0 : i32, i32, i32
  }
  func.func @transform_2(%arg0: i32) -> (i32, i32, i32) {
    %c0_i32 = arith.constant 0 : i32
    %c0_i32_0 = arith.constant 0 : i32
    %c0_i32_1 = arith.constant 0 : i32
    return %arg0, %c0_i32, %c0_i32_0 : i32, i32, i32
  }
}

module attributes {stable_mosaic.version = 11 : i64} {
  func.func @_linear_res_ln_kernel(%arg0: i32, %arg1: i32, %arg2: memref<16x32xf32, #tpu.memory_space<vmem>>, %arg3: memref<32x32xf32, #tpu.memory_space<vmem>>, %arg4: memref<1x32xf32, #tpu.memory_space<vmem>>, %arg5: memref<16x32xf32, #tpu.memory_space<vmem>>, %arg6: memref<1x32xf32, #tpu.memory_space<vmem>>, %arg7: memref<1x32xf32, #tpu.memory_space<vmem>>, %arg8: memref<16x32xf32, #tpu.memory_space<vmem>>, %arg9: memref<16x32xf32, #tpu.memory_space<vmem>>) attributes {dimension_semantics = [#tpu.dimension_semantics<parallel>, #tpu.dimension_semantics<arbitrary>], iteration_bounds = array<i64: 1, 1>, scalar_prefetch = 0 : i64, scratch_operands = 1 : i64, tpu.core_type = #tpu.core_type<tc>, window_params = [{transform_indices = @transform_0, window_bounds = array<i64: 16, 32>}, {transform_indices = @transform_1, window_bounds = array<i64: 32, 32>}, {pipeline_mode = #tpu.pipeline_mode<synchronous>, transform_indices = @transform_2, window_bounds = array<i64: 1, 32>}, {transform_indices = @transform_3, window_bounds = array<i64: 16, 32>}, {pipeline_mode = #tpu.pipeline_mode<synchronous>, transform_indices = @transform_4, window_bounds = array<i64: 1, 32>}, {pipeline_mode = #tpu.pipeline_mode<synchronous>, transform_indices = @transform_5, window_bounds = array<i64: 1, 32>}, {transform_indices = @transform_6, window_bounds = array<i64: 16, 32>}]} {
    %c0_i32 = arith.constant 0 : i32
    %0 = arith.cmpi eq, %arg1, %c0_i32 : i32
    %1 = arith.extui %0 : i1 to i32
    %c0_i32_0 = arith.constant 0 : i32
    %2 = arith.cmpi ne, %1, %c0_i32_0 : i32
    scf.if %2 {
      %cst_10 = arith.constant 0.000000e+00 : f32
      %14 = vector.broadcast %cst_10 : f32 to vector<16x32xf32>
      %c0_11 = arith.constant 0 : index
      %c0_12 = arith.constant 0 : index
      %15 = vector.load %arg9[%c0_11, %c0_12] : memref<16x32xf32, #tpu.memory_space<vmem>>, vector<16x32xf32>
      tpu.vector_store %arg9[%c0_11, %c0_12], %14 {strides = array<i32>} : memref<16x32xf32, #tpu.memory_space<vmem>>, vector<16x32xf32>,
    } else {
    }
    %c0 = arith.constant 0 : index
    %c0_1 = arith.constant 0 : index
    %3 = vector.load %arg9[%c0, %c0_1] : memref<16x32xf32, #tpu.memory_space<vmem>>, vector<16x32xf32>
    %c0_2 = arith.constant 0 : index
    %c0_3 = arith.constant 0 : index
    %4 = vector.load %arg2[%c0_2, %c0_3] : memref<16x32xf32, #tpu.memory_space<vmem>>, vector<16x32xf32>
    %5 = arith.truncf %4 : vector<16x32xf32> to vector<16x32xbf16>
    %c0_4 = arith.constant 0 : index
    %c0_5 = arith.constant 0 : index
    %6 = vector.load %arg3[%c0_4, %c0_5] : memref<32x32xf32, #tpu.memory_space<vmem>>, vector<32x32xf32>
    %7 = arith.truncf %6 : vector<32x32xf32> to vector<32x32xbf16>
    %cst = arith.constant dense<0.000000e+00> : vector<16x32xf32>
    %8 = tpu.matmul %5, %7, %cst {dimension_numbers = #tpu.dot_dimension_numbers<[1], [0], [0], [1], [0, 0, 1, 1], [], []>} : vector<16x32xbf16>, vector<32x32xbf16>, vector<16x32xf32> -> vector<16x32xf32>
    %9 = arith.addf %3, %8 : vector<16x32xf32>
    %c0_6 = arith.constant 0 : index
    %c0_7 = arith.constant 0 : index
    %10 = vector.load %arg9[%c0_6, %c0_7] : memref<16x32xf32, #tpu.memory_space<vmem>>, vector<16x32xf32>
    tpu.vector_store %arg9[%c0_6, %c0_7], %9 {strides = array<i32>} : memref<16x32xf32, #tpu.memory_space<vmem>>, vector<16x32xf32>,
    %c0_i32_8 = arith.constant 0 : i32
    %11 = arith.cmpi eq, %arg1, %c0_i32_8 : i32
    %12 = arith.extui %11 : i1 to i32
    %c0_i32_9 = arith.constant 0 : i32
    %13 = arith.cmpi ne, %12, %c0_i32_9 : i32
    scf.if %13 {
      %c0_10 = arith.constant 0 : index
      %c0_11 = arith.constant 0 : index
      %14 = vector.load %arg9[%c0_10, %c0_11] : memref<16x32xf32, #tpu.memory_space<vmem>>, vector<16x32xf32>
      %c0_12 = arith.constant 0 : index
      %c0_13 = arith.constant 0 : index
      %15 = vector.load %arg4[%c0_12, %c0_13] : memref<1x32xf32, #tpu.memory_space<vmem>>, vector<1x32xf32>
      %16 = vector.broadcast %15 : vector<1x32xf32> to vector<16x32xf32>
      %17 = arith.addf %14, %16 : vector<16x32xf32>
      %c0_14 = arith.constant 0 : index
      %c0_15 = arith.constant 0 : index
      %18 = vector.load %arg5[%c0_14, %c0_15] : memref<16x32xf32, #tpu.memory_space<vmem>>, vector<16x32xf32>
      %19 = arith.addf %17, %18 : vector<16x32xf32>
      %cst_16 = arith.constant dense<0.000000e+00> : vector<16xf32>
      %20 = vector.multi_reduction <add>, %19, %cst_16 [1] : vector<16x32xf32> to vector<16xf32>
      %21 = vector.shape_cast %20 : vector<16xf32> to vector<16x1xf32>
      %cst_17 = arith.constant 3.200000e+01 : f32
      %22 = vector.broadcast %cst_17 : f32 to vector<16x1xf32>
      %23 = arith.divf %21, %22 : vector<16x1xf32>
      %24 = vector.broadcast %23 : vector<16x1xf32> to vector<16x32xf32>
      %25 = arith.subf %19, %24 : vector<16x32xf32>
      %26 = arith.mulf %25, %25 : vector<16x32xf32>
      %cst_18 = arith.constant dense<0.000000e+00> : vector<16xf32>
      %27 = vector.multi_reduction <add>, %26, %cst_18 [1] : vector<16x32xf32> to vector<16xf32>
      %28 = vector.shape_cast %27 : vector<16xf32> to vector<16x1xf32>
      %cst_19 = arith.constant 3.200000e+01 : f32
      %29 = vector.broadcast %cst_19 : f32 to vector<16x1xf32>
      %30 = arith.divf %28, %29 : vector<16x1xf32>
      %31 = vector.broadcast %23 : vector<16x1xf32> to vector<16x32xf32>
      %32 = arith.subf %19, %31 : vector<16x32xf32>
      %cst_20 = arith.constant 9.99999996E-13 : f32
      %33 = vector.broadcast %cst_20 : f32 to vector<16x1xf32>
      %34 = arith.addf %30, %33 : vector<16x1xf32>
      %35 = math.rsqrt %34 : vector<16x1xf32>
      %36 = vector.broadcast %35 : vector<16x1xf32> to vector<16x32xf32>
      %37 = arith.mulf %32, %36 : vector<16x32xf32>
      %c0_21 = arith.constant 0 : index
      %c0_22 = arith.constant 0 : index
      %38 = vector.load %arg6[%c0_21, %c0_22] : memref<1x32xf32, #tpu.memory_space<vmem>>, vector<1x32xf32>
      %39 = vector.broadcast %38 : vector<1x32xf32> to vector<16x32xf32>
      %40 = arith.mulf %37, %39 : vector<16x32xf32>
      %c0_23 = arith.constant 0 : index
      %c0_24 = arith.constant 0 : index
      %41 = vector.load %arg7[%c0_23, %c0_24] : memref<1x32xf32, #tpu.memory_space<vmem>>, vector<1x32xf32>
      %42 = vector.broadcast %41 : vector<1x32xf32> to vector<16x32xf32>
      %43 = arith.addf %40, %42 : vector<16x32xf32>
      %c0_25 = arith.constant 0 : index
      %c0_26 = arith.constant 0 : index
      %44 = vector.load %arg8[%c0_25, %c0_26] : memref<16x32xf32, #tpu.memory_space<vmem>>, vector<16x32xf32>
      tpu.vector_store %arg8[%c0_25, %c0_26], %43 {strides = array<i32>} : memref<16x32xf32, #tpu.memory_space<vmem>>, vector<16x32xf32>,
    } else {
    }
    return
  }
  func.func @transform_0(%arg0: i32, %arg1: i32) -> (i32, i32) {
    %c0_i32 = arith.constant 0 : i32
    return %arg0, %arg1 : i32, i32
  }
  func.func @transform_1(%arg0: i32, %arg1: i32) -> (i32, i32) {
    %c0_i32 = arith.constant 0 : i32
    %c0_i32_0 = arith.constant 0 : i32
    return %arg1, %c0_i32 : i32, i32
  }
  func.func @transform_2(%arg0: i32, %arg1: i32) -> (i32, i32) {
    %c0_i32 = arith.constant 0 : i32
    %c0_i32_0 = arith.constant 0 : i32
    %c0_i32_1 = arith.constant 0 : i32
    return %c0_i32, %c0_i32_0 : i32, i32
  }
  func.func @transform_3(%arg0: i32, %arg1: i32) -> (i32, i32) {
    %c0_i32 = arith.constant 0 : i32
    %c0_i32_0 = arith.constant 0 : i32
    return %arg0, %c0_i32 : i32, i32
  }
  func.func @transform_4(%arg0: i32, %arg1: i32) -> (i32, i32) {
    %c0_i32 = arith.constant 0 : i32
    %c0_i32_0 = arith.constant 0 : i32
    %c0_i32_1 = arith.constant 0 : i32
    return %c0_i32, %c0_i32_0 : i32, i32
  }
  func.func @transform_5(%arg0: i32, %arg1: i32) -> (i32, i32) {
    %c0_i32 = arith.constant 0 : i32
    %c0_i32_0 = arith.constant 0 : i32
    %c0_i32_1 = arith.constant 0 : i32
    return %c0_i32, %c0_i32_0 : i32, i32
  }
  func.func @transform_6(%arg0: i32, %arg1: i32) -> (i32, i32) {
    %c0_i32 = arith.constant 0 : i32
    %c0_i32_0 = arith.constant 0 : i32
    return %arg0, %c0_i32 : i32, i32
  }
}

module attributes {stable_mosaic.version = 11 : i64} {
  func.func @_linear_kernel(%arg0: i32, %arg1: i32, %arg2: i32, %arg3: memref<16x32xf32, #tpu.memory_space<vmem>>, %arg4: memref<32x96xf32, #tpu.memory_space<vmem>>, %arg5: memref<1x96xf32, #tpu.memory_space<vmem>>, %arg6: memref<16x96xf32, #tpu.memory_space<vmem>>, %arg7: memref<16x96xf32, #tpu.memory_space<vmem>>) attributes {dimension_semantics = [#tpu.dimension_semantics<parallel>, #tpu.dimension_semantics<parallel>, #tpu.dimension_semantics<arbitrary>], iteration_bounds = array<i64: 1, 1, 1>, scalar_prefetch = 0 : i64, scratch_operands = 1 : i64, tpu.core_type = #tpu.core_type<tc>, window_params = [{transform_indices = @transform_0, window_bounds = array<i64: 16, 32>}, {transform_indices = @transform_1, window_bounds = array<i64: 32, 96>}, {transform_indices = @transform_2, window_bounds = array<i64: 1, 96>}, {transform_indices = @transform_3, window_bounds = array<i64: 16, 96>}]} {
    %c0_i32 = arith.constant 0 : i32
    %0 = arith.cmpi eq, %arg2, %c0_i32 : i32
    %1 = arith.extui %0 : i1 to i32
    %c0_i32_0 = arith.constant 0 : i32
    %2 = arith.cmpi ne, %1, %c0_i32_0 : i32
    scf.if %2 {
      %cst_10 = arith.constant 0.000000e+00 : f32
      %14 = vector.broadcast %cst_10 : f32 to vector<16x96xf32>
      %c0_11 = arith.constant 0 : index
      %c0_12 = arith.constant 0 : index
      %15 = vector.load %arg7[%c0_11, %c0_12] : memref<16x96xf32, #tpu.memory_space<vmem>>, vector<16x96xf32>
      tpu.vector_store %arg7[%c0_11, %c0_12], %14 {strides = array<i32>} : memref<16x96xf32, #tpu.memory_space<vmem>>, vector<16x96xf32>,
    } else {
    }
    %c0 = arith.constant 0 : index
    %c0_1 = arith.constant 0 : index
    %3 = vector.load %arg7[%c0, %c0_1] : memref<16x96xf32, #tpu.memory_space<vmem>>, vector<16x96xf32>
    %c0_2 = arith.constant 0 : index
    %c0_3 = arith.constant 0 : index
    %4 = vector.load %arg3[%c0_2, %c0_3] : memref<16x32xf32, #tpu.memory_space<vmem>>, vector<16x32xf32>
    %5 = arith.truncf %4 : vector<16x32xf32> to vector<16x32xbf16>
    %c0_4 = arith.constant 0 : index
    %c0_5 = arith.constant 0 : index
    %6 = vector.load %arg4[%c0_4, %c0_5] : memref<32x96xf32, #tpu.memory_space<vmem>>, vector<32x96xf32>
    %7 = arith.truncf %6 : vector<32x96xf32> to vector<32x96xbf16>
    %cst = arith.constant dense<0.000000e+00> : vector<16x96xf32>
    %8 = tpu.matmul %5, %7, %cst {dimension_numbers = #tpu.dot_dimension_numbers<[1], [0], [0], [1], [0, 0, 1, 1], [], []>} : vector<16x32xbf16>, vector<32x96xbf16>, vector<16x96xf32> -> vector<16x96xf32>
    %9 = arith.addf %3, %8 : vector<16x96xf32>
    %c0_6 = arith.constant 0 : index
    %c0_7 = arith.constant 0 : index
    %10 = vector.load %arg7[%c0_6, %c0_7] : memref<16x96xf32, #tpu.memory_space<vmem>>, vector<16x96xf32>
    tpu.vector_store %arg7[%c0_6, %c0_7], %9 {strides = array<i32>} : memref<16x96xf32, #tpu.memory_space<vmem>>, vector<16x96xf32>,
    %c0_i32_8 = arith.constant 0 : i32
    %11 = arith.cmpi eq, %arg2, %c0_i32_8 : i32
    %12 = arith.extui %11 : i1 to i32
    %c0_i32_9 = arith.constant 0 : i32
    %13 = arith.cmpi ne, %12, %c0_i32_9 : i32
    scf.if %13 {
      %c0_10 = arith.constant 0 : index
      %c0_11 = arith.constant 0 : index
      %14 = vector.load %arg7[%c0_10, %c0_11] : memref<16x96xf32, #tpu.memory_space<vmem>>, vector<16x96xf32>
      %c0_12 = arith.constant 0 : index
      %c0_13 = arith.constant 0 : index
      %15 = vector.load %arg5[%c0_12, %c0_13] : memref<1x96xf32, #tpu.memory_space<vmem>>, vector<1x96xf32>
      %16 = vector.broadcast %15 : vector<1x96xf32> to vector<16x96xf32>
      %17 = arith.addf %14, %16 : vector<16x96xf32>
      %c0_14 = arith.constant 0 : index
      %c0_15 = arith.constant 0 : index
      %18 = vector.load %arg6[%c0_14, %c0_15] : memref<16x96xf32, #tpu.memory_space<vmem>>, vector<16x96xf32>
      tpu.vector_store %arg6[%c0_14, %c0_15], %17 {strides = array<i32>} : memref<16x96xf32, #tpu.memory_space<vmem>>, vector<16x96xf32>,
    } else {
    }
    return
  }
  func.func @transform_0(%arg0: i32, %arg1: i32, %arg2: i32) -> (i32, i32) {
    %c0_i32 = arith.constant 0 : i32
    return %arg0, %arg2 : i32, i32
  }
  func.func @transform_1(%arg0: i32, %arg1: i32, %arg2: i32) -> (i32, i32) {
    %c0_i32 = arith.constant 0 : i32
    return %arg2, %arg1 : i32, i32
  }
  func.func @transform_2(%arg0: i32, %arg1: i32, %arg2: i32) -> (i32, i32) {
    %c0_i32 = arith.constant 0 : i32
    %c0_i32_0 = arith.constant 0 : i32
    return %c0_i32, %arg1 : i32, i32
  }
  func.func @transform_3(%arg0: i32, %arg1: i32, %arg2: i32) -> (i32, i32) {
    %c0_i32 = arith.constant 0 : i32
    return %arg0, %arg1 : i32, i32
  }
}

module attributes {stable_mosaic.version = 11 : i64} {
  func.func @_linear_kernel(%arg0: i32, %arg1: i32, %arg2: i32, %arg3: memref<16x32xf32, #tpu.memory_space<vmem>>, %arg4: memref<32x64xf32, #tpu.memory_space<vmem>>, %arg5: memref<1x64xf32, #tpu.memory_space<vmem>>, %arg6: memref<16x64xf32, #tpu.memory_space<vmem>>, %arg7: memref<16x64xf32, #tpu.memory_space<vmem>>) attributes {dimension_semantics = [#tpu.dimension_semantics<parallel>, #tpu.dimension_semantics<parallel>, #tpu.dimension_semantics<arbitrary>], iteration_bounds = array<i64: 1, 1, 1>, scalar_prefetch = 0 : i64, scratch_operands = 1 : i64, tpu.core_type = #tpu.core_type<tc>, window_params = [{transform_indices = @transform_0, window_bounds = array<i64: 16, 32>}, {transform_indices = @transform_1, window_bounds = array<i64: 32, 64>}, {transform_indices = @transform_2, window_bounds = array<i64: 1, 64>}, {transform_indices = @transform_3, window_bounds = array<i64: 16, 64>}]} {
    %c0_i32 = arith.constant 0 : i32
    %0 = arith.cmpi eq, %arg2, %c0_i32 : i32
    %1 = arith.extui %0 : i1 to i32
    %c0_i32_0 = arith.constant 0 : i32
    %2 = arith.cmpi ne, %1, %c0_i32_0 : i32
    scf.if %2 {
      %cst_10 = arith.constant 0.000000e+00 : f32
      %14 = vector.broadcast %cst_10 : f32 to vector<16x64xf32>
      %c0_11 = arith.constant 0 : index
      %c0_12 = arith.constant 0 : index
      %15 = vector.load %arg7[%c0_11, %c0_12] : memref<16x64xf32, #tpu.memory_space<vmem>>, vector<16x64xf32>
      tpu.vector_store %arg7[%c0_11, %c0_12], %14 {strides = array<i32>} : memref<16x64xf32, #tpu.memory_space<vmem>>, vector<16x64xf32>,
    } else {
    }
    %c0 = arith.constant 0 : index
    %c0_1 = arith.constant 0 : index
    %3 = vector.load %arg7[%c0, %c0_1] : memref<16x64xf32, #tpu.memory_space<vmem>>, vector<16x64xf32>
    %c0_2 = arith.constant 0 : index
    %c0_3 = arith.constant 0 : index
    %4 = vector.load %arg3[%c0_2, %c0_3] : memref<16x32xf32, #tpu.memory_space<vmem>>, vector<16x32xf32>
    %5 = arith.truncf %4 : vector<16x32xf32> to vector<16x32xbf16>
    %c0_4 = arith.constant 0 : index
    %c0_5 = arith.constant 0 : index
    %6 = vector.load %arg4[%c0_4, %c0_5] : memref<32x64xf32, #tpu.memory_space<vmem>>, vector<32x64xf32>
    %7 = arith.truncf %6 : vector<32x64xf32> to vector<32x64xbf16>
    %cst = arith.constant dense<0.000000e+00> : vector<16x64xf32>
    %8 = tpu.matmul %5, %7, %cst {dimension_numbers = #tpu.dot_dimension_numbers<[1], [0], [0], [1], [0, 0, 1, 1], [], []>} : vector<16x32xbf16>, vector<32x64xbf16>, vector<16x64xf32> -> vector<16x64xf32>
    %9 = arith.addf %3, %8 : vector<16x64xf32>
    %c0_6 = arith.constant 0 : index
    %c0_7 = arith.constant 0 : index
    %10 = vector.load %arg7[%c0_6, %c0_7] : memref<16x64xf32, #tpu.memory_space<vmem>>, vector<16x64xf32>
    tpu.vector_store %arg7[%c0_6, %c0_7], %9 {strides = array<i32>} : memref<16x64xf32, #tpu.memory_space<vmem>>, vector<16x64xf32>,
    %c0_i32_8 = arith.constant 0 : i32
    %11 = arith.cmpi eq, %arg2, %c0_i32_8 : i32
    %12 = arith.extui %11 : i1 to i32
    %c0_i32_9 = arith.constant 0 : i32
    %13 = arith.cmpi ne, %12, %c0_i32_9 : i32
    scf.if %13 {
      %c0_10 = arith.constant 0 : index
      %c0_11 = arith.constant 0 : index
      %14 = vector.load %arg7[%c0_10, %c0_11] : memref<16x64xf32, #tpu.memory_space<vmem>>, vector<16x64xf32>
      %c0_12 = arith.constant 0 : index
      %c0_13 = arith.constant 0 : index
      %15 = vector.load %arg5[%c0_12, %c0_13] : memref<1x64xf32, #tpu.memory_space<vmem>>, vector<1x64xf32>
      %16 = vector.broadcast %15 : vector<1x64xf32> to vector<16x64xf32>
      %17 = arith.addf %14, %16 : vector<16x64xf32>
      %cst_14 = arith.constant 5.000000e-01 : f32
      %18 = vector.broadcast %cst_14 : f32 to vector<16x64xf32>
      %19 = arith.mulf %18, %17 : vector<16x64xf32>
      %cst_15 = arith.constant 0.707106769 : f32
      %20 = vector.broadcast %cst_15 : f32 to vector<16x64xf32>
      %21 = arith.mulf %17, %20 : vector<16x64xf32>
      %22 = math.erf %21 : vector<16x64xf32>
      %cst_16 = arith.constant 1.000000e+00 : f32
      %23 = vector.broadcast %cst_16 : f32 to vector<16x64xf32>
      %24 = arith.addf %23, %22 : vector<16x64xf32>
      %25 = arith.mulf %19, %24 : vector<16x64xf32>
      %c0_17 = arith.constant 0 : index
      %c0_18 = arith.constant 0 : index
      %26 = vector.load %arg6[%c0_17, %c0_18] : memref<16x64xf32, #tpu.memory_space<vmem>>, vector<16x64xf32>
      tpu.vector_store %arg6[%c0_17, %c0_18], %25 {strides = array<i32>} : memref<16x64xf32, #tpu.memory_space<vmem>>, vector<16x64xf32>,
    } else {
    }
    return
  }
  func.func @transform_0(%arg0: i32, %arg1: i32, %arg2: i32) -> (i32, i32) {
    %c0_i32 = arith.constant 0 : i32
    return %arg0, %arg2 : i32, i32
  }
  func.func @transform_1(%arg0: i32, %arg1: i32, %arg2: i32) -> (i32, i32) {
    %c0_i32 = arith.constant 0 : i32
    return %arg2, %arg1 : i32, i32
  }
  func.func @transform_2(%arg0: i32, %arg1: i32, %arg2: i32) -> (i32, i32) {
    %c0_i32 = arith.constant 0 : i32
    %c0_i32_0 = arith.constant 0 : i32
    return %c0_i32, %arg1 : i32, i32
  }
  func.func @transform_3(%arg0: i32, %arg1: i32, %arg2: i32) -> (i32, i32) {
    %c0_i32 = arith.constant 0 : i32
    return %arg0, %arg1 : i32, i32
  }
}

module attributes {stable_mosaic.version = 11 : i64} {
  func.func @_linear_res_ln_kernel(%arg0: i32, %arg1: i32, %arg2: memref<16x64xf32, #tpu.memory_space<vmem>>, %arg3: memref<64x32xf32, #tpu.memory_space<vmem>>, %arg4: memref<1x32xf32, #tpu.memory_space<vmem>>, %arg5: memref<16x32xf32, #tpu.memory_space<vmem>>, %arg6: memref<1x32xf32, #tpu.memory_space<vmem>>, %arg7: memref<1x32xf32, #tpu.memory_space<vmem>>, %arg8: memref<16x32xf32, #tpu.memory_space<vmem>>, %arg9: memref<16x32xf32, #tpu.memory_space<vmem>>) attributes {dimension_semantics = [#tpu.dimension_semantics<parallel>, #tpu.dimension_semantics<arbitrary>], iteration_bounds = array<i64: 1, 1>, scalar_prefetch = 0 : i64, scratch_operands = 1 : i64, tpu.core_type = #tpu.core_type<tc>, window_params = [{transform_indices = @transform_0, window_bounds = array<i64: 16, 64>}, {transform_indices = @transform_1, window_bounds = array<i64: 64, 32>}, {pipeline_mode = #tpu.pipeline_mode<synchronous>, transform_indices = @transform_2, window_bounds = array<i64: 1, 32>}, {transform_indices = @transform_3, window_bounds = array<i64: 16, 32>}, {pipeline_mode = #tpu.pipeline_mode<synchronous>, transform_indices = @transform_4, window_bounds = array<i64: 1, 32>}, {pipeline_mode = #tpu.pipeline_mode<synchronous>, transform_indices = @transform_5, window_bounds = array<i64: 1, 32>}, {transform_indices = @transform_6, window_bounds = array<i64: 16, 32>}]} {
    %c0_i32 = arith.constant 0 : i32
    %0 = arith.cmpi eq, %arg1, %c0_i32 : i32
    %1 = arith.extui %0 : i1 to i32
    %c0_i32_0 = arith.constant 0 : i32
    %2 = arith.cmpi ne, %1, %c0_i32_0 : i32
    scf.if %2 {
      %cst_10 = arith.constant 0.000000e+00 : f32
      %14 = vector.broadcast %cst_10 : f32 to vector<16x32xf32>
      %c0_11 = arith.constant 0 : index
      %c0_12 = arith.constant 0 : index
      %15 = vector.load %arg9[%c0_11, %c0_12] : memref<16x32xf32, #tpu.memory_space<vmem>>, vector<16x32xf32>
      tpu.vector_store %arg9[%c0_11, %c0_12], %14 {strides = array<i32>} : memref<16x32xf32, #tpu.memory_space<vmem>>, vector<16x32xf32>,
    } else {
    }
    %c0 = arith.constant 0 : index
    %c0_1 = arith.constant 0 : index
    %3 = vector.load %arg9[%c0, %c0_1] : memref<16x32xf32, #tpu.memory_space<vmem>>, vector<16x32xf32>
    %c0_2 = arith.constant 0 : index
    %c0_3 = arith.constant 0 : index
    %4 = vector.load %arg2[%c0_2, %c0_3] : memref<16x64xf32, #tpu.memory_space<vmem>>, vector<16x64xf32>
    %5 = arith.truncf %4 : vector<16x64xf32> to vector<16x64xbf16>
    %c0_4 = arith.constant 0 : index
    %c0_5 = arith.constant 0 : index
    %6 = vector.load %arg3[%c0_4, %c0_5] : memref<64x32xf32, #tpu.memory_space<vmem>>, vector<64x32xf32>
    %7 = arith.truncf %6 : vector<64x32xf32> to vector<64x32xbf16>
    %cst = arith.constant dense<0.000000e+00> : vector<16x32xf32>
    %8 = tpu.matmul %5, %7, %cst {dimension_numbers = #tpu.dot_dimension_numbers<[1], [0], [0], [1], [0, 0, 1, 1], [], []>} : vector<16x64xbf16>, vector<64x32xbf16>, vector<16x32xf32> -> vector<16x32xf32>
    %9 = arith.addf %3, %8 : vector<16x32xf32>
    %c0_6 = arith.constant 0 : index
    %c0_7 = arith.constant 0 : index
    %10 = vector.load %arg9[%c0_6, %c0_7] : memref<16x32xf32, #tpu.memory_space<vmem>>, vector<16x32xf32>
    tpu.vector_store %arg9[%c0_6, %c0_7], %9 {strides = array<i32>} : memref<16x32xf32, #tpu.memory_space<vmem>>, vector<16x32xf32>,
    %c0_i32_8 = arith.constant 0 : i32
    %11 = arith.cmpi eq, %arg1, %c0_i32_8 : i32
    %12 = arith.extui %11 : i1 to i32
    %c0_i32_9 = arith.constant 0 : i32
    %13 = arith.cmpi ne, %12, %c0_i32_9 : i32
    scf.if %13 {
      %c0_10 = arith.constant 0 : index
      %c0_11 = arith.constant 0 : index
      %14 = vector.load %arg9[%c0_10, %c0_11] : memref<16x32xf32, #tpu.memory_space<vmem>>, vector<16x32xf32>
      %c0_12 = arith.constant 0 : index
      %c0_13 = arith.constant 0 : index
      %15 = vector.load %arg4[%c0_12, %c0_13] : memref<1x32xf32, #tpu.memory_space<vmem>>, vector<1x32xf32>
      %16 = vector.broadcast %15 : vector<1x32xf32> to vector<16x32xf32>
      %17 = arith.addf %14, %16 : vector<16x32xf32>
      %c0_14 = arith.constant 0 : index
      %c0_15 = arith.constant 0 : index
      %18 = vector.load %arg5[%c0_14, %c0_15] : memref<16x32xf32, #tpu.memory_space<vmem>>, vector<16x32xf32>
      %19 = arith.addf %17, %18 : vector<16x32xf32>
      %cst_16 = arith.constant dense<0.000000e+00> : vector<16xf32>
      %20 = vector.multi_reduction <add>, %19, %cst_16 [1] : vector<16x32xf32> to vector<16xf32>
      %21 = vector.shape_cast %20 : vector<16xf32> to vector<16x1xf32>
      %cst_17 = arith.constant 3.200000e+01 : f32
      %22 = vector.broadcast %cst_17 : f32 to vector<16x1xf32>
      %23 = arith.divf %21, %22 : vector<16x1xf32>
      %24 = vector.broadcast %23 : vector<16x1xf32> to vector<16x32xf32>
      %25 = arith.subf %19, %24 : vector<16x32xf32>
      %26 = arith.mulf %25, %25 : vector<16x32xf32>
      %cst_18 = arith.constant dense<0.000000e+00> : vector<16xf32>
      %27 = vector.multi_reduction <add>, %26, %cst_18 [1] : vector<16x32xf32> to vector<16xf32>
      %28 = vector.shape_cast %27 : vector<16xf32> to vector<16x1xf32>
      %cst_19 = arith.constant 3.200000e+01 : f32
      %29 = vector.broadcast %cst_19 : f32 to vector<16x1xf32>
      %30 = arith.divf %28, %29 : vector<16x1xf32>
      %31 = vector.broadcast %23 : vector<16x1xf32> to vector<16x32xf32>
      %32 = arith.subf %19, %31 : vector<16x32xf32>
      %cst_20 = arith.constant 9.99999996E-13 : f32
      %33 = vector.broadcast %cst_20 : f32 to vector<16x1xf32>
      %34 = arith.addf %30, %33 : vector<16x1xf32>
      %35 = math.rsqrt %34 : vector<16x1xf32>
      %36 = vector.broadcast %35 : vector<16x1xf32> to vector<16x32xf32>
      %37 = arith.mulf %32, %36 : vector<16x32xf32>
      %c0_21 = arith.constant 0 : index
      %c0_22 = arith.constant 0 : index
      %38 = vector.load %arg6[%c0_21, %c0_22] : memref<1x32xf32, #tpu.memory_space<vmem>>, vector<1x32xf32>
      %39 = vector.broadcast %38 : vector<1x32xf32> to vector<16x32xf32>
      %40 = arith.mulf %37, %39 : vector<16x32xf32>
      %c0_23 = arith.constant 0 : index
      %c0_24 = arith.constant 0 : index
      %41 = vector.load %arg7[%c0_23, %c0_24] : memref<1x32xf32, #tpu.memory_space<vmem>>, vector<1x32xf32>
      %42 = vector.broadcast %41 : vector<1x32xf32> to vector<16x32xf32>
      %43 = arith.addf %40, %42 : vector<16x32xf32>
      %c0_25 = arith.constant 0 : index
      %c0_26 = arith.constant 0 : index
      %44 = vector.load %arg8[%c0_25, %c0_26] : memref<16x32xf32, #tpu.memory_space<vmem>>, vector<16x32xf32>
      tpu.vector_store %arg8[%c0_25, %c0_26], %43 {strides = array<i32>} : memref<16x32xf32, #tpu.memory_space<vmem>>, vector<16x32xf32>,
    } else {
    }
    return
  }
  func.func @transform_0(%arg0: i32, %arg1: i32) -> (i32, i32) {
    %c0_i32 = arith.constant 0 : i32
    return %arg0, %arg1 : i32, i32
  }
  func.func @transform_1(%arg0: i32, %arg1: i32) -> (i32, i32) {
    %c0_i32 = arith.constant 0 : i32
    %c0_i32_0 = arith.constant 0 : i32
    return %arg1, %c0_i32 : i32, i32
  }
  func.func @transform_2(%arg0: i32, %arg1: i32) -> (i32, i32) {
    %c0_i32 = arith.constant 0 : i32
    %c0_i32_0 = arith.constant 0 : i32
    %c0_i32_1 = arith.constant 0 : i32
    return %c0_i32, %c0_i32_0 : i32, i32
  }
  func.func @transform_3(%arg0: i32, %arg1: i32) -> (i32, i32) {
    %c0_i32 = arith.constant 0 : i32
    %c0_i32_0 = arith.constant 0 : i32
    return %arg0, %c0_i32 : i32, i32
  }
  func.func @transform_4(%arg0: i32, %arg1: i32) -> (i32, i32) {
    %c0_i32 = arith.constant 0 : i32
    %c0_i32_0 = arith.constant 0 : i32
    %c0_i32_1 = arith.constant 0 : i32
    return %c0_i32, %c0_i32_0 : i32, i32
  }
  func.func @transform_5(%arg0: i32, %arg1: i32) -> (i32, i32) {
    %c0_i32 = arith.constant 0 : i32
    %c0_i32_0 = arith.constant 0 : i32
    %c0_i32_1 = arith.constant 0 : i32
    return %c0_i32, %c0_i32_0 : i32, i32
  }
  func.func @transform_6(%arg0: i32, %arg1: i32) -> (i32, i32) {
    %c0_i32 = arith.constant 0 : i32
    %c0_i32_0 = arith.constant 0 : i32
    return %arg0, %c0_i32 : i32, i32
  }
}

module attributes {stable_mosaic.version = 11 : i64} {
  func.func @_linear_res_ln_kernel(%arg0: i32, %arg1: i32, %arg2: memref<16x64xf32, #tpu.memory_space<vmem>>, %arg3: memref<64x32xf32, #tpu.memory_space<vmem>>, %arg4: memref<1x32xf32, #tpu.memory_space<vmem>>, %arg5: memref<16x32xf32, #tpu.memory_space<vmem>>, %arg6: memref<1x32xf32, #tpu.memory_space<vmem>>, %arg7: memref<1x32xf32, #tpu.memory_space<vmem>>, %arg8: memref<16x32xf32, #tpu.memory_space<vmem>>, %arg9: memref<16x32xf32, #tpu.memory_space<vmem>>) attributes {dimension_semantics = [#tpu.dimension_semantics<parallel>, #tpu.dimension_semantics<arbitrary>], iteration_bounds = array<i64: 1, 1>, scalar_prefetch = 0 : i64, scratch_operands = 1 : i64, tpu.core_type = #tpu.core_type<tc>, window_params = [{transform_indices = @transform_0, window_bounds = array<i64: 16, 64>}, {transform_indices = @transform_1, window_bounds = array<i64: 64, 32>}, {pipeline_mode = #tpu.pipeline_mode<synchronous>, transform_indices = @transform_2, window_bounds = array<i64: 1, 32>}, {transform_indices = @transform_3, window_bounds = array<i64: 16, 32>}, {pipeline_mode = #tpu.pipeline_mode<synchronous>, transform_indices = @transform_4, window_bounds = array<i64: 1, 32>}, {pipeline_mode = #tpu.pipeline_mode<synchronous>, transform_indices = @transform_5, window_bounds = array<i64: 1, 32>}, {transform_indices = @transform_6, window_bounds = array<i64: 16, 32>}]} {
    %c0_i32 = arith.constant 0 : i32
    %0 = arith.cmpi eq, %arg1, %c0_i32 : i32
    %1 = arith.extui %0 : i1 to i32
    %c0_i32_0 = arith.constant 0 : i32
    %2 = arith.cmpi ne, %1, %c0_i32_0 : i32
    scf.if %2 {
      %cst_10 = arith.constant 0.000000e+00 : f32
      %14 = vector.broadcast %cst_10 : f32 to vector<16x32xf32>
      %c0_11 = arith.constant 0 : index
      %c0_12 = arith.constant 0 : index
      %15 = vector.load %arg9[%c0_11, %c0_12] : memref<16x32xf32, #tpu.memory_space<vmem>>, vector<16x32xf32>
      tpu.vector_store %arg9[%c0_11, %c0_12], %14 {strides = array<i32>} : memref<16x32xf32, #tpu.memory_space<vmem>>, vector<16x32xf32>,
    } else {
    }
    %c0 = arith.constant 0 : index
    %c0_1 = arith.constant 0 : index
    %3 = vector.load %arg9[%c0, %c0_1] : memref<16x32xf32, #tpu.memory_space<vmem>>, vector<16x32xf32>
    %c0_2 = arith.constant 0 : index
    %c0_3 = arith.constant 0 : index
    %4 = vector.load %arg2[%c0_2, %c0_3] : memref<16x64xf32, #tpu.memory_space<vmem>>, vector<16x64xf32>
    %5 = arith.truncf %4 : vector<16x64xf32> to vector<16x64xbf16>
    %c0_4 = arith.constant 0 : index
    %c0_5 = arith.constant 0 : index
    %6 = vector.load %arg3[%c0_4, %c0_5] : memref<64x32xf32, #tpu.memory_space<vmem>>, vector<64x32xf32>
    %7 = arith.truncf %6 : vector<64x32xf32> to vector<64x32xbf16>
    %cst = arith.constant dense<0.000000e+00> : vector<16x32xf32>
    %8 = tpu.matmul %5, %7, %cst {dimension_numbers = #tpu.dot_dimension_numbers<[1], [0], [0], [1], [0, 0, 1, 1], [], []>} : vector<16x64xbf16>, vector<64x32xbf16>, vector<16x32xf32> -> vector<16x32xf32>
    %9 = arith.addf %3, %8 : vector<16x32xf32>
    %c0_6 = arith.constant 0 : index
    %c0_7 = arith.constant 0 : index
    %10 = vector.load %arg9[%c0_6, %c0_7] : memref<16x32xf32, #tpu.memory_space<vmem>>, vector<16x32xf32>
    tpu.vector_store %arg9[%c0_6, %c0_7], %9 {strides = array<i32>} : memref<16x32xf32, #tpu.memory_space<vmem>>, vector<16x32xf32>,
    %c0_i32_8 = arith.constant 0 : i32
    %11 = arith.cmpi eq, %arg1, %c0_i32_8 : i32
    %12 = arith.extui %11 : i1 to i32
    %c0_i32_9 = arith.constant 0 : i32
    %13 = arith.cmpi ne, %12, %c0_i32_9 : i32
    scf.if %13 {
      %c0_10 = arith.constant 0 : index
      %c0_11 = arith.constant 0 : index
      %14 = vector.load %arg9[%c0_10, %c0_11] : memref<16x32xf32, #tpu.memory_space<vmem>>, vector<16x32xf32>
      %c0_12 = arith.constant 0 : index
      %c0_13 = arith.constant 0 : index
      %15 = vector.load %arg4[%c0_12, %c0_13] : memref<1x32xf32, #tpu.memory_space<vmem>>, vector<1x32xf32>
      %16 = vector.broadcast %15 : vector<1x32xf32> to vector<16x32xf32>
      %17 = arith.addf %14, %16 : vector<16x32xf32>
      %c0_14 = arith.constant 0 : index
      %c0_15 = arith.constant 0 : index
      %18 = vector.load %arg5[%c0_14, %c0_15] : memref<16x32xf32, #tpu.memory_space<vmem>>, vector<16x32xf32>
      %19 = arith.addf %17, %18 : vector<16x32xf32>
      %cst_16 = arith.constant dense<0.000000e+00> : vector<16xf32>
      %20 = vector.multi_reduction <add>, %19, %cst_16 [1] : vector<16x32xf32> to vector<16xf32>
      %21 = vector.shape_cast %20 : vector<16xf32> to vector<16x1xf32>
      %cst_17 = arith.constant 3.200000e+01 : f32
      %22 = vector.broadcast %cst_17 : f32 to vector<16x1xf32>
      %23 = arith.divf %21, %22 : vector<16x1xf32>
      %24 = vector.broadcast %23 : vector<16x1xf32> to vector<16x32xf32>
      %25 = arith.subf %19, %24 : vector<16x32xf32>
      %26 = arith.mulf %25, %25 : vector<16x32xf32>
      %cst_18 = arith.constant dense<0.000000e+00> : vector<16xf32>
      %27 = vector.multi_reduction <add>, %26, %cst_18 [1] : vector<16x32xf32> to vector<16xf32>
      %28 = vector.shape_cast %27 : vector<16xf32> to vector<16x1xf32>
      %cst_19 = arith.constant 3.200000e+01 : f32
      %29 = vector.broadcast %cst_19 : f32 to vector<16x1xf32>
      %30 = arith.divf %28, %29 : vector<16x1xf32>
      %31 = vector.broadcast %23 : vector<16x1xf32> to vector<16x32xf32>
      %32 = arith.subf %19, %31 : vector<16x32xf32>
      %cst_20 = arith.constant 9.99999996E-13 : f32
      %33 = vector.broadcast %cst_20 : f32 to vector<16x1xf32>
      %34 = arith.addf %30, %33 : vector<16x1xf32>
      %35 = math.rsqrt %34 : vector<16x1xf32>
      %36 = vector.broadcast %35 : vector<16x1xf32> to vector<16x32xf32>
      %37 = arith.mulf %32, %36 : vector<16x32xf32>
      %c0_21 = arith.constant 0 : index
      %c0_22 = arith.constant 0 : index
      %38 = vector.load %arg6[%c0_21, %c0_22] : memref<1x32xf32, #tpu.memory_space<vmem>>, vector<1x32xf32>
      %39 = vector.broadcast %38 : vector<1x32xf32> to vector<16x32xf32>
      %40 = arith.mulf %37, %39 : vector<16x32xf32>
      %c0_23 = arith.constant 0 : index
      %c0_24 = arith.constant 0 : index
      %41 = vector.load %arg7[%c0_23, %c0_24] : memref<1x32xf32, #tpu.memory_space<vmem>>, vector<1x32xf32>
      %42 = vector.broadcast %41 : vector<1x32xf32> to vector<16x32xf32>
      %43 = arith.addf %40, %42 : vector<16x32xf32>
      %c0_25 = arith.constant 0 : index
      %c0_26 = arith.constant 0 : index
      %44 = vector.load %arg8[%c0_25, %c0_26] : memref<16x32xf32, #tpu.memory_space<vmem>>, vector<16x32xf32>
      tpu.vector_store %arg8[%c0_25, %c0_26], %43 {strides = array<i32>} : memref<16x32xf32, #tpu.memory_space<vmem>>, vector<16x32xf32>,
    } else {
    }
    return
  }
  func.func @transform_0(%arg0: i32, %arg1: i32) -> (i32, i32) {
    %c0_i32 = arith.constant 0 : i32
    return %arg0, %arg1 : i32, i32
  }
  func.func @transform_1(%arg0: i32, %arg1: i32) -> (i32, i32) {
    %c0_i32 = arith.constant 0 : i32
    %c0_i32_0 = arith.constant 0 : i32
    return %arg1, %c0_i32 : i32, i32
  }
  func.func @transform_2(%arg0: i32, %arg1: i32) -> (i32, i32) {
    %c0_i32 = arith.constant 0 : i32
    %c0_i32_0 = arith.constant 0 : i32
    %c0_i32_1 = arith.constant 0 : i32
    return %c0_i32, %c0_i32_0 : i32, i32
  }
  func.func @transform_3(%arg0: i32, %arg1: i32) -> (i32, i32) {
    %c0_i32 = arith.constant 0 : i32
    %c0_i32_0 = arith.constant 0 : i32
    return %arg0, %c0_i32 : i32, i32
  }
  func.func @transform_4(%arg0: i32, %arg1: i32) -> (i32, i32) {
    %c0_i32 = arith.constant 0 : i32
    %c0_i32_0 = arith.constant 0 : i32
    %c0_i32_1 = arith.constant 0 : i32
    return %c0_i32, %c0_i32_0 : i32, i32
  }
  func.func @transform_5(%arg0: i32, %arg1: i32) -> (i32, i32) {
    %c0_i32 = arith.constant 0 : i32
    %c0_i32_0 = arith.constant 0 : i32
    %c0_i32_1 = arith.constant 0 : i32
    return %c0_i32, %c0_i32_0 : i32, i32
  }
  func.func @transform_6(%arg0: i32, %arg1: i32) -> (i32, i32) {
    %c0_i32 = arith.constant 0 : i32
    %c0_i32_0 = arith.constant 0 : i32
    return %arg0, %c0_i32 : i32, i32
  }
}

</mosaic_0001>

<llo_original>
// kernel: _lambda_.11
$region0: #{_lambda_.11}
  #allocation0 [shape = 'u32[]', space=smem, size = 0x4, offset = 0x4, fixed_abs, tag = 'smem constant byte address 0x4 - core index']
  #allocation1 [shape = 'u32[144,128]{1,0:T(1,128)}', space=vmem, size = 0x12000, scoped, tag = 'internal scratch']
  %s0 = inlined_call_operand.vmem [shape: f32[16,32], index: 0, kind: input, shape index: {}]
  %s1 = inlined_call_operand.vmem [shape: f32[16,32], index: 1, kind: input, shape index: {}]
  %s2 = inlined_call_operand.vmem [shape: f32[1,32], index: 2, kind: input, shape index: {}]
  %s3 = inlined_call_operand.vmem [shape: f32[1,32], index: 3, kind: input, shape index: {}]
  %s4 = inlined_call_operand.vmem [shape: f32[16,32], index: 4, kind: output, shape index: {}]
  %s5 = sld [smem:[#allocation0]]
  $region26: #{_lambda_.11} parent=0
    _
  %s7 = ssub.s32 1, %s5
  %s8 = scalar_select 0, %s7, %s5
  // Predicated region
  $region2: #{_lambda_.11} parent=0 // pred_check
    _
  $region3: #{_lambda_.11} parent=0 // pred_check_branch
    %10 = sbr.rel (0) target = $region5
  $region4: #{_lambda_.11} parent=0 // pred_region
    _
  $region5: #{_lambda_.11} parent=0 // pred_fallthru
    _
  // Predicated region
  $region6: #{_lambda_.11} parent=0 // pred_check
    _
  $region7: #{_lambda_.11} parent=0 // pred_check_branch
    %12 = sbr.rel (0) target = $region9
  $region8: #{_lambda_.11} parent=0 // pred_region
    _
  $region9: #{_lambda_.11} parent=0 // pred_fallthru
    _
  // Predicated region
  $region10: #{_lambda_.11} parent=0 // pred_check
    _
  $region11: #{_lambda_.11} parent=0 // pred_check_branch
    %14 = sbr.rel (0) target = $region13
  $region12: #{_lambda_.11} parent=0 // pred_region
    _
  $region13: #{_lambda_.11} parent=0 // pred_fallthru
    _
  // Predicated region
  $region14: #{_lambda_.11} parent=0 // pred_check
    _
  $region15: #{_lambda_.11} parent=0 // pred_check_branch
    %16 = sbr.rel (0) target = $region17
  $region16: #{_lambda_.11} parent=0 // pred_region
    _
  $region17: #{_lambda_.11} parent=0 // pred_fallthru
    _
  %v17 = vld [vmem:[%s0] sm:$0xff]
  %v18 = vld [vmem:[%s0 + $0x8] sm:$0xff]
  %v19 = vld [vmem:[%s1] sm:$0xff]
  %v20 = vld [vmem:[%s1 + $0x8] sm:$0xff]
  %v21 = vadd.f32 %v17, %v19
  %v22 = vadd.f32 %v18, %v20
  %vm23 = vcmask 261120
  %v24 = vsel %vm23, %v21, 0.0
  %25 = vadd.xlane.f32.xlu0 %v24
  %v26 = vpop.xlane.xlu0 %25
  %v27 = vsel %vm23, %v22, 0.0
  %28 = vadd.xlane.f32.xlu0 %v27
  %v29 = vpop.xlane.xlu0 %28
  %v30 = vrcp.pop 32.0
  %v31 = vmul.f32 %v26, %v30
  %v32 = vmul.f32 %v29, %v30
  %v33 = vsub.f32 %v21, %v31
  %v34 = vsub.f32 %v22, %v32
  %v35 = vmul.f32 %v33, %v33
  %v36 = vmul.f32 %v34, %v34
  %v37 = vsel %vm23, %v35, 0.0
  %38 = vadd.xlane.f32.xlu0 %v37
  %v39 = vpop.xlane.xlu0 %38
  %v40 = vsel %vm23, %v36, 0.0
  %41 = vadd.xlane.f32.xlu0 %v40
  %v42 = vpop.xlane.xlu0 %41
  %v43 = vmul.f32 %v39, %v30
  %v44 = vmul.f32 %v42, %v30
  %v45 = vadd.f32 %v43, 1e-12
  %v46 = vadd.f32 %v44, 1e-12
  %v47 = vrsqrt.pop %v45
  %v48 = vrsqrt.pop %v46
  %v49 = vmul.f32 %v33, %v47
  %v50 = vmul.f32 %v34, %v48
  %v51 = vld [vmem:[%s2] sm:$0x1]
  %v53 = vlaneseq
  %v54 = vshrl.u32 %v53, 7
  %v55 = vsub.s32 0, %v54
  %v56 = vrot.slane %v51, %v55
  %v58 = vmul.f32 %v49, %v56
  %v59 = vmul.f32 %v50, %v56
  %v60 = vld [vmem:[%s3] sm:$0x1]
  %v62 = vlaneseq
  %v63 = vshrl.u32 %v62, 7
  %v64 = vsub.s32 0, %v63
  %v65 = vrot.slane %v60, %v64
  %v67 = vadd.f32 %v58, %v65
  %v68 = vadd.f32 %v59, %v65
  %69 = vst.msk [vmem:[%s4] sm:$0xff] %vm23, %v67
  %70 = vst.msk [vmem:[%s4 + $0x8] sm:$0xff] %vm23, %v68
  // Predicated region
  $region18: #{_lambda_.11} parent=0 // pred_check
    _
  $region19: #{_lambda_.11} parent=0 // pred_check_branch
    %72 = sbr.rel (0) target = $region21
  $region20: #{_lambda_.11} parent=0 // pred_region
    _
  $region21: #{_lambda_.11} parent=0 // pred_fallthru
    _
  // Predicated region
  $region22: #{_lambda_.11} parent=0 // pred_check
    _
  $region23: #{_lambda_.11} parent=0 // pred_check_branch
    %74 = sbr.rel (0) target = $region25
  $region24: #{_lambda_.11} parent=0 // pred_region
    _
  $region25: #{_lambda_.11} parent=0 // pred_fallthru
    _

// kernel: _lambda_.14
$region0: #{_lambda_.14}
  #allocation0 [shape = 'u32[]', space=smem, size = 0x4, offset = 0x4, fixed_abs, tag = 'smem constant byte address 0x4 - core index']
  #allocation1 [shape = 'u32[144,128]{1,0:T(1,128)}', space=vmem, size = 0x12000, scoped, tag = 'internal scratch']
  #allocation2 [shape = 'f32[16,32]{1,0:T(8,128)}', space=vmem, size = 0x2000, scoped, tag = 'scratch operand']
  %s0 = inlined_call_operand.vmem [shape: f32[16,32], index: 0, kind: input, shape index: {}]
  %s1 = inlined_call_operand.vmem [shape: f32[32,32], index: 1, kind: input, shape index: {}]
  %s2 = inlined_call_operand.vmem [shape: f32[1,32], index: 2, kind: input, shape index: {}]
  %s3 = inlined_call_operand.vmem [shape: f32[16,32], index: 3, kind: input, shape index: {}]
  %s4 = inlined_call_operand.vmem [shape: f32[1,32], index: 4, kind: input, shape index: {}]
  %s5 = inlined_call_operand.vmem [shape: f32[1,32], index: 5, kind: input, shape index: {}]
  %s6 = inlined_call_operand.vmem [shape: f32[16,32], index: 6, kind: output, shape index: {}]
  %s7 = sld [smem:[#allocation0]]
  $region42: #{_lambda_.14} parent=0
    _
  %s9 = ssub.s32 1, %s7
  %s10 = scalar_select 0, %s9, %s7
  // Predicated region
  $region2: #{_lambda_.14} parent=0 // pred_check
    _
  $region3: #{_lambda_.14} parent=0 // pred_check_branch
    %12 = sbr.rel (0) target = $region5
  $region4: #{_lambda_.14} parent=0 // pred_region
    _
  $region5: #{_lambda_.14} parent=0 // pred_fallthru
    _
  // Predicated region
  $region6: #{_lambda_.14} parent=0 // pred_check
    _
  $region7: #{_lambda_.14} parent=0 // pred_check_branch
    %14 = sbr.rel (0) target = $region9
  $region8: #{_lambda_.14} parent=0 // pred_region
    _
  $region9: #{_lambda_.14} parent=0 // pred_fallthru
    _
  // Predicated region
  $region10: #{_lambda_.14} parent=0 // pred_check
    _
  $region11: #{_lambda_.14} parent=0 // pred_check_branch
    %16 = sbr.rel (0) target = $region13
  $region12: #{_lambda_.14} parent=0 // pred_region
    _
  $region13: #{_lambda_.14} parent=0 // pred_fallthru
    _
  // Predicated region
  $region14: #{_lambda_.14} parent=0 // pred_check
    _
  $region15: #{_lambda_.14} parent=0 // pred_check_branch
    %18 = sbr.rel (0) target = $region17
  $region16: #{_lambda_.14} parent=0 // pred_region
    _
  $region17: #{_lambda_.14} parent=0 // pred_fallthru
    _
  // Predicated region
  $region18: #{_lambda_.14} parent=0 // pred_check
    _
  $region19: #{_lambda_.14} parent=0 // pred_check_branch
    %20 = sbr.rel (0) target = $region21
  $region20: #{_lambda_.14} parent=0 // pred_region
    _
  $region21: #{_lambda_.14} parent=0 // pred_fallthru
    _
  // Predicated region
  $region22: #{_lambda_.14} parent=0 // pred_check
    _
  $region23: #{_lambda_.14} parent=0 // pred_check_branch
    %22 = sbr.rel (0) target = $region25
  $region24: #{_lambda_.14} parent=0 // pred_region
    _
  $region25: #{_lambda_.14} parent=0 // pred_fallthru
    _
  %p24 = scmp.eq.s32.totalorder 0, 0
  // Predicated region
  $region26: #{_lambda_.14} parent=0 // pred_check
    %p25 = pneg %p24
  $region27: #{_lambda_.14} parent=0 // pred_check_branch
    %27 = sbr.rel (%p25) target = $region29
  $region28: #{_lambda_.14} parent=0 // pred_region
    %vm28 = vcmask 261120
    %29 = vst.msk [vmem:[#allocation2] sm:$0xff] %vm28, 0.0
    %30 = vst.msk [vmem:[#allocation2 + $0x8] sm:$0xff] %vm28, 0.0
  $region29: #{_lambda_.14} parent=0 // pred_fallthru
    _
  %v31 = vld [vmem:[#allocation2] sm:$0xff]
  %v32 = vld [vmem:[#allocation2 + $0x8] sm:$0xff]
  %v33 = vld [vmem:[%s0] sm:$0xff]
  %v34 = vld [vmem:[%s0 + $0x8] sm:$0xff]
  %v35 = vpack.c.bf16 %v34, %v33
  %v36 = vld [vmem:[%s1] sm:$0xff]
  %v37 = vld [vmem:[%s1 + $0x8] sm:$0xff]
  %v38 = vld [vmem:[%s1 + $0x10] sm:$0xff]
  %v39 = vld [vmem:[%s1 + $0x18] sm:$0xff]
  %v40 = vpack.c.bf16 %v37, %v36
  %v41 = vpack.c.bf16 %v39, %v38
  %vm42 = vcmask 261120
  %v44 = vsel %vm42, %v35, 0
  %46 = vmatprep.subr.bf16.mxu0 0
  %47 = vmatpush1.bf16.msra.mxu0 %v40
  %48 = vmatprep.subr.bf16.mxu0 0
  %49 = vmatpush1.bf16.msra.mxu0 %v41
  %50 = vmatprep.subr.bf16.mxu0 0
  %51 = vmatpush1.bf16.msra.mxu0 0
  %52 = vmatprep.subr.bf16.mxu0 0
  %53 = vmatpush1.bf16.msra.mxu0 0
  %54 = vmatprep.subr.bf16.mxu0 0
  %55 = vmatpush1.bf16.msra.mxu0 0
  %56 = vmatprep.subr.bf16.mxu0 0
  %57 = vmatpush1.bf16.msra.mxu0 0
  %58 = vmatprep.subr.bf16.mxu0 0
  %59 = vmatpush1.bf16.msra.mxu0 0
  %60 = vmatprep.subr.bf16.mxu0 0
  %61 = vmatpush1.bf16.msra.mxu0 0
  %62 = vmatprep.subr.bf16.mxu0 0
  %63 = vmatpush1.bf16.msra.mxu0 0
  %64 = vmatprep.subr.bf16.mxu0 0
  %65 = vmatpush1.bf16.msra.mxu0 0
  %66 = vmatprep.subr.bf16.mxu0 0
  %67 = vmatpush1.bf16.msra.mxu0 0
  %68 = vmatprep.subr.bf16.mxu0 0
  %69 = vmatpush1.bf16.msra.mxu0 0
  %70 = vmatprep.subr.bf16.mxu0 0
  %71 = vmatpush1.bf16.msra.mxu0 0
  %72 = vmatprep.subr.bf16.mxu0 0
  %73 = vmatpush1.bf16.msra.mxu0 0
  %74 = vmatprep.subr.bf16.mxu0 0
  %75 = vmatpush1.bf16.msra.mxu0 0
  %76 = vmatprep.subr.bf16.mxu0 0
  %77 = vmatpush1.bf16.msra.mxu0 0
  %78 = vmatprep.mubr.bf16.mxu0 0
  %79 = vmatmul.mubr.bf16.gmra.mrb[0].mxu0 %v44
  %v80 = vpop.f32.mrb[0].mxu0
  %v81 = vadd.f32 0.0, %v80
  %v82 = vpop.f32.mrb[0].mxu0
  %v83 = vpop.f32.mrb[0].mxu0
  %v84 = vadd.f32 0.0, %v83
  %v85 = vpop.f32.mrb[0].mxu0
  %86 = vdwg.mxu0
  %v87 = vadd.f32 %v31, %v81
  %v88 = vadd.f32 %v32, %v84
  %89 = vst.msk [vmem:[#allocation2] sm:$0xff] %vm42, %v87
  %90 = vst.msk [vmem:[#allocation2 + $0x8] sm:$0xff] %vm42, %v88
  // Predicated region
  $region30: #{_lambda_.14} parent=0 // pred_check
    %p91 = pneg %p24
  $region31: #{_lambda_.14} parent=0 // pred_check_branch
    %93 = sbr.rel (%p91) target = $region33
  $region32: #{_lambda_.14} parent=0 // pred_region
    %v94 = vld [vmem:[#allocation2] sm:$0xff]
    %v95 = vld [vmem:[#allocation2 + $0x8] sm:$0xff]
    %v96 = vld [vmem:[%s2] sm:$0x1]
    %v98 = vlaneseq
    %v99 = vshrl.u32 %v98, 7
    %v100 = vsub.s32 0, %v99
    %v101 = vrot.slane %v96, %v100
    %v103 = vadd.f32 %v94, %v101
    %v104 = vadd.f32 %v95, %v101
    %v105 = vld [vmem:[%s3] sm:$0xff]
    %v106 = vld [vmem:[%s3 + $0x8] sm:$0xff]
    %v107 = vadd.f32 %v103, %v105
    %v108 = vadd.f32 %v104, %v106
    %v109 = vsel %vm42, %v107, 0.0
    %110 = vadd.xlane.f32.xlu0 %v109
    %v111 = vpop.xlane.xlu0 %110
    %v112 = vsel %vm42, %v108, 0.0
    %113 = vadd.xlane.f32.xlu0 %v112
    %v114 = vpop.xlane.xlu0 %113
    %v115 = vrcp.pop 32.0
    %v116 = vmul.f32 %v111, %v115
    %v117 = vmul.f32 %v114, %v115
    %v118 = vsub.f32 %v107, %v116
    %v119 = vsub.f32 %v108, %v117
    %v120 = vmul.f32 %v118, %v118
    %v121 = vmul.f32 %v119, %v119
    %v122 = vsel %vm42, %v120, 0.0
    %123 = vadd.xlane.f32.xlu0 %v122
    %v124 = vpop.xlane.xlu0 %123
    %v125 = vsel %vm42, %v121, 0.0
    %126 = vadd.xlane.f32.xlu0 %v125
    %v127 = vpop.xlane.xlu0 %126
    %v128 = vmul.f32 %v124, %v115
    %v129 = vmul.f32 %v127, %v115
    %v130 = vadd.f32 %v128, 1e-12
    %v131 = vadd.f32 %v129, 1e-12
    %v132 = vrsqrt.pop %v130
    %v133 = vrsqrt.pop %v131
    %v134 = vmul.f32 %v118, %v132
    %v135 = vmul.f32 %v119, %v133
    %v136 = vld [vmem:[%s4] sm:$0x1]
    %v138 = vlaneseq
    %v139 = vshrl.u32 %v138, 7
    %v140 = vsub.s32 0, %v139
    %v141 = vrot.slane %v136, %v140
    %v143 = vmul.f32 %v134, %v141
    %v144 = vmul.f32 %v135, %v141
    %v145 = vld [vmem:[%s5] sm:$0x1]
    %v147 = vlaneseq
    %v148 = vshrl.u32 %v147, 7
    %v149 = vsub.s32 0, %v148
    %v150 = vrot.slane %v145, %v149
    %v152 = vadd.f32 %v143, %v150
    %v153 = vadd.f32 %v144, %v150
    %154 = vst.msk [vmem:[%s6] sm:$0xff] %vm42, %v152
    %155 = vst.msk [vmem:[%s6 + $0x8] sm:$0xff] %vm42, %v153
  $region33: #{_lambda_.14} parent=0 // pred_fallthru
    _
  // Predicated region
  $region34: #{_lambda_.14} parent=0 // pred_check
    _
  $region35: #{_lambda_.14} parent=0 // pred_check_branch
    %157 = sbr.rel (0) target = $region37
  $region36: #{_lambda_.14} parent=0 // pred_region
    _
  $region37: #{_lambda_.14} parent=0 // pred_fallthru
    _
  // Predicated region
  $region38: #{_lambda_.14} parent=0 // pred_check
    _
  $region39: #{_lambda_.14} parent=0 // pred_check_branch
    %159 = sbr.rel (0) target = $region41
  $region40: #{_lambda_.14} parent=0 // pred_region
    _
  $region41: #{_lambda_.14} parent=0 // pred_fallthru
    _

// kernel: _lambda_.12
$region0: #{_lambda_.12}
  #allocation0 [shape = 'u32[]', space=smem, size = 0x4, offset = 0x4, fixed_abs, tag = 'smem constant byte address 0x4 - core index']
  #allocation1 [shape = 'u32[144,128]{1,0:T(1,128)}', space=vmem, size = 0x12000, scoped, tag = 'internal scratch']
  #allocation2 [shape = 'f32[16,96]{1,0:T(8,128)}', space=vmem, size = 0x2000, scoped, tag = 'scratch operand']
  %s0 = inlined_call_operand.vmem [shape: f32[16,32], index: 0, kind: input, shape index: {}]
  %s1 = inlined_call_operand.vmem [shape: f32[32,96], index: 1, kind: input, shape index: {}]
  %s2 = inlined_call_operand.vmem [shape: f32[1,96], index: 2, kind: input, shape index: {}]
  %s3 = inlined_call_operand.vmem [shape: f32[16,96], index: 3, kind: output, shape index: {}]
  %s4 = sld [smem:[#allocation0]]
  $region30: #{_lambda_.12} parent=0
    _
  %s6 = ssub.s32 1, %s4
  %s7 = scalar_select 0, %s6, %s4
  // Predicated region
  $region2: #{_lambda_.12} parent=0 // pred_check
    _
  $region3: #{_lambda_.12} parent=0 // pred_check_branch
    %9 = sbr.rel (0) target = $region5
  $region4: #{_lambda_.12} parent=0 // pred_region
    _
  $region5: #{_lambda_.12} parent=0 // pred_fallthru
    _
  // Predicated region
  $region6: #{_lambda_.12} parent=0 // pred_check
    _
  $region7: #{_lambda_.12} parent=0 // pred_check_branch
    %11 = sbr.rel (0) target = $region9
  $region8: #{_lambda_.12} parent=0 // pred_region
    _
  $region9: #{_lambda_.12} parent=0 // pred_fallthru
    _
  // Predicated region
  $region10: #{_lambda_.12} parent=0 // pred_check
    _
  $region11: #{_lambda_.12} parent=0 // pred_check_branch
    %13 = sbr.rel (0) target = $region13
  $region12: #{_lambda_.12} parent=0 // pred_region
    _
  $region13: #{_lambda_.12} parent=0 // pred_fallthru
    _
  %p15 = scmp.eq.s32.totalorder 0, 0
  // Predicated region
  $region14: #{_lambda_.12} parent=0 // pred_check
    %p16 = pneg %p15
  $region15: #{_lambda_.12} parent=0 // pred_check_branch
    %18 = sbr.rel (%p16) target = $region17
  $region16: #{_lambda_.12} parent=0 // pred_region
    %vm19 = vcmask 785408
    %20 = vst.msk [vmem:[#allocation2] sm:$0xff] %vm19, 0.0
    %21 = vst.msk [vmem:[#allocation2 + $0x8] sm:$0xff] %vm19, 0.0
  $region17: #{_lambda_.12} parent=0 // pred_fallthru
    _
  %v22 = vld [vmem:[#allocation2] sm:$0xff]
  %v23 = vld [vmem:[#allocation2 + $0x8] sm:$0xff]
  %v24 = vld [vmem:[%s0] sm:$0xff]
  %v25 = vld [vmem:[%s0 + $0x8] sm:$0xff]
  %v26 = vpack.c.bf16 %v25, %v24
  %v27 = vld [vmem:[%s1] sm:$0xff]
  %v28 = vld [vmem:[%s1 + $0x8] sm:$0xff]
  %v29 = vld [vmem:[%s1 + $0x10] sm:$0xff]
  %v30 = vld [vmem:[%s1 + $0x18] sm:$0xff]
  %v31 = vpack.c.bf16 %v28, %v27
  %v32 = vpack.c.bf16 %v30, %v29
  %vm33 = vcmask 261120
  %v35 = vsel %vm33, %v26, 0
  %37 = vmatprep.subr.bf16.mxu0 0
  %38 = vmatpush1.bf16.msra.mxu0 %v31
  %39 = vmatprep.subr.bf16.mxu0 0
  %40 = vmatpush1.bf16.msra.mxu0 %v32
  %41 = vmatprep.subr.bf16.mxu0 0
  %42 = vmatpush1.bf16.msra.mxu0 0
  %43 = vmatprep.subr.bf16.mxu0 0
  %44 = vmatpush1.bf16.msra.mxu0 0
  %45 = vmatprep.subr.bf16.mxu0 0
  %46 = vmatpush1.bf16.msra.mxu0 0
  %47 = vmatprep.subr.bf16.mxu0 0
  %48 = vmatpush1.bf16.msra.mxu0 0
  %49 = vmatprep.subr.bf16.mxu0 0
  %50 = vmatpush1.bf16.msra.mxu0 0
  %51 = vmatprep.subr.bf16.mxu0 0
  %52 = vmatpush1.bf16.msra.mxu0 0
  %53 = vmatprep.subr.bf16.mxu0 0
  %54 = vmatpush1.bf16.msra.mxu0 0
  %55 = vmatprep.subr.bf16.mxu0 0
  %56 = vmatpush1.bf16.msra.mxu0 0
  %57 = vmatprep.subr.bf16.mxu0 0
  %58 = vmatpush1.bf16.msra.mxu0 0
  %59 = vmatprep.subr.bf16.mxu0 0
  %60 = vmatpush1.bf16.msra.mxu0 0
  %61 = vmatprep.subr.bf16.mxu0 0
  %62 = vmatpush1.bf16.msra.mxu0 0
  %63 = vmatprep.subr.bf16.mxu0 0
  %64 = vmatpush1.bf16.msra.mxu0 0
  %65 = vmatprep.subr.bf16.mxu0 0
  %66 = vmatpush1.bf16.msra.mxu0 0
  %67 = vmatprep.subr.bf16.mxu0 0
  %68 = vmatpush1.bf16.msra.mxu0 0
  %69 = vmatprep.mubr.bf16.mxu0 0
  %70 = vmatmul.mubr.bf16.gmra.mrb[0].mxu0 %v35
  %v71 = vpop.f32.mrb[0].mxu0
  %v72 = vadd.f32 0.0, %v71
  %v73 = vpop.f32.mrb[0].mxu0
  %v74 = vpop.f32.mrb[0].mxu0
  %v75 = vadd.f32 0.0, %v74
  %v76 = vpop.f32.mrb[0].mxu0
  %77 = vdwg.mxu0
  %v78 = vadd.f32 %v22, %v72
  %v79 = vadd.f32 %v23, %v75
  %vm80 = vcmask 785408
  %81 = vst.msk [vmem:[#allocation2] sm:$0xff] %vm80, %v78
  %82 = vst.msk [vmem:[#allocation2 + $0x8] sm:$0xff] %vm80, %v79
  // Predicated region
  $region18: #{_lambda_.12} parent=0 // pred_check
    %p83 = pneg %p15
  $region19: #{_lambda_.12} parent=0 // pred_check_branch
    %85 = sbr.rel (%p83) target = $region21
  $region20: #{_lambda_.12} parent=0 // pred_region
    %v86 = vld [vmem:[#allocation2] sm:$0xff]
    %v87 = vld [vmem:[#allocation2 + $0x8] sm:$0xff]
    %v88 = vld [vmem:[%s2] sm:$0x1]
    %v90 = vlaneseq
    %v91 = vshrl.u32 %v90, 7
    %v92 = vsub.s32 0, %v91
    %v93 = vrot.slane %v88, %v92
    %v95 = vadd.f32 %v86, %v93
    %v96 = vadd.f32 %v87, %v93
    %97 = vst.msk [vmem:[%s3] sm:$0xff] %vm80, %v95
    %98 = vst.msk [vmem:[%s3 + $0x8] sm:$0xff] %vm80, %v96
  $region21: #{_lambda_.12} parent=0 // pred_fallthru
    _
  // Predicated region
  $region22: #{_lambda_.12} parent=0 // pred_check
    _
  $region23: #{_lambda_.12} parent=0 // pred_check_branch
    %100 = sbr.rel (0) target = $region25
  $region24: #{_lambda_.12} parent=0 // pred_region
    _
  $region25: #{_lambda_.12} parent=0 // pred_fallthru
    _
  // Predicated region
  $region26: #{_lambda_.12} parent=0 // pred_check
    _
  $region27: #{_lambda_.12} parent=0 // pred_check_branch
    %102 = sbr.rel (0) target = $region29
  $region28: #{_lambda_.12} parent=0 // pred_region
    _
  $region29: #{_lambda_.12} parent=0 // pred_fallthru
    _

// kernel: _lambda_.13
$region0: #{_lambda_.13}
  #allocation0 [shape = 'u32[]', space=smem, size = 0x4, offset = 0x4, fixed_abs, tag = 'smem constant byte address 0x4 - core index']
  #allocation1 [shape = 'u32[144,128]{1,0:T(1,128)}', space=vmem, size = 0x12000, scoped, tag = 'internal scratch']
  %s0 = inlined_call_operand.vmem [shape: f32[2,8,96], index: 0, kind: input, shape index: {}]
  %s1 = inlined_call_operand.vmem [shape: f32[2,1,8], index: 1, kind: input, shape index: {}]
  %s2 = inlined_call_operand.vmem [shape: f32[2,8,32], index: 2, kind: output, shape index: {}]
  %s3 = sld [smem:[#allocation0]]
  $region41: #{_lambda_.13} parent=0
    _
  %s5 = ssub.s32 1, %s3
  %s6 = scalar_select 0, %s5, %s3
  loop: start=0, step=1, limit=4
  $region2: #{_lambda_.13} parent=0 // loop_pre_header
    _
  $region3: #{_lambda_.13} parent=0 // loop_header
    %s8 = sphi 0, %s12
    %p9 = scmp.ge.s32.totalorder %s8, 4
    %s18 = sphi 0, %s20
    %s21 = sphi 0, %s18
    %s22 = sphi 0, %s21
    %s38 = sphi 0, %s22
    %s44 = sphi 0, %s46
    %s47 = sphi 0, %s44
    %s48 = sphi 0, %s47
    %s64 = sphi 0, %s48
    %s70 = sphi 0, %s72
    %s73 = sphi 0, %s70
    %s74 = sphi 0, %s73
    %s90 = sphi 0, %s74
  $region4: #{_lambda_.13} parent=0 // loop_header_branch
    %11 = sbr.rel (%p9) target = $region8
  $region5: #{_lambda_.13} parent=0 // loop_body
    %s13 = ssub.s32 %s8, 1
    %s14 = ssub.s32 %s8, 2
    %s15 = sadd.s32 %s8, 1
    %s16 = ssub.s32 %s8, %s15
    %p17 = scmp.eq.s32.totalorder %s16, 0
    %s19 = sadd.s32 %s18, 1
    %s20 = scalar_select %p17, %s18, %s19
    %p23 = pneg %p17
    %p24 = scmp.eq.s32.totalorder %s8, 1
    %p25 = por %p23, %p24
    %p26 = scmp.ne.s32.totalorder %s18, %s21
    %p27 = scmp.eq.s32.totalorder %s8, 0
    %p28 = por %p26, %p27
    %p29 = scmp.ne.s32.totalorder %s18, %s21
    %p30 = scmp.eq.s32.totalorder %s13, 1
    %p31 = por %p29, %p30
    %p32 = scmp.ne.s32.totalorder %s21, %s22
    %p33 = scmp.eq.s32.totalorder %s13, 0
    %p34 = por %p32, %p33
    %p35 = scmp.ne.s32.totalorder %s21, %s22
    %p36 = scmp.eq.s32.totalorder %s14, 1
    %p37 = por %p35, %p36
    %p39 = scmp.ne.s32.totalorder %s22, %s38
    %p40 = scmp.eq.s32.totalorder %s14, 0
    %p41 = por %p39, %p40
    %s42 = ssub.s32 %s8, %s15
    %p43 = scmp.eq.s32.totalorder %s42, 0
    %s45 = sadd.s32 %s44, 1
    %s46 = scalar_select %p43, %s44, %s45
    %p49 = pneg %p43
    %p50 = scmp.eq.s32.totalorder %s8, 1
    %p51 = por %p49, %p50
    %p52 = scmp.ne.s32.totalorder %s44, %s47
    %p53 = scmp.eq.s32.totalorder %s8, 0
    %p54 = por %p52, %p53
    %p55 = scmp.ne.s32.totalorder %s44, %s47
    %p56 = scmp.eq.s32.totalorder %s13, 1
    %p57 = por %p55, %p56
    %p58 = scmp.ne.s32.totalorder %s47, %s48
    %p59 = scmp.eq.s32.totalorder %s13, 0
    %p60 = por %p58, %p59
    %p61 = scmp.ne.s32.totalorder %s47, %s48
    %p62 = scmp.eq.s32.totalorder %s14, 1
    %p63 = por %p61, %p62
    %p65 = scmp.ne.s32.totalorder %s48, %s64
    %p66 = scmp.eq.s32.totalorder %s14, 0
    %p67 = por %p65, %p66
    %s68 = ssub.s32 %s8, %s15
    %p69 = scmp.eq.s32.totalorder %s68, 0
    %s71 = sadd.s32 %s70, 1
    %s72 = scalar_select %p69, %s70, %s71
    %p75 = pneg %p69
    %p76 = scmp.eq.s32.totalorder %s8, 1
    %p77 = por %p75, %p76
    %p78 = scmp.ne.s32.totalorder %s70, %s73
    %p79 = scmp.eq.s32.totalorder %s8, 0
    %p80 = por %p78, %p79
    %p81 = scmp.ne.s32.totalorder %s70, %s73
    %p82 = scmp.eq.s32.totalorder %s13, 1
    %p83 = por %p81, %p82
    %p84 = scmp.ne.s32.totalorder %s73, %s74
    %p85 = scmp.eq.s32.totalorder %s13, 0
    %p86 = por %p84, %p85
    %p87 = scmp.ne.s32.totalorder %s73, %s74
    %p88 = scmp.eq.s32.totalorder %s14, 1
    %p89 = por %p87, %p88
    %p91 = scmp.ne.s32.totalorder %s74, %s90
    %p92 = scmp.eq.s32.totalorder %s14, 0
    %p93 = por %p91, %p92
    %p94 = scmp.le.s32.totalorder 1, %s8
    %p95 = scmp.lt.s32.totalorder %s8, 3
    %p96 = pnand %p94, %p95
    %p97 = pneg %p96
    // Predicated region
    $region9: #{_lambda_.13} parent=5 // pred_check
      _
    $region10: #{_lambda_.13} parent=5 // pred_check_branch
      %99 = sbr.rel (%p96) target = $region12
    $region11: #{_lambda_.13} parent=5 // pred_region
      %s100 = ssub.s32 %s8, 1
    $region12: #{_lambda_.13} parent=5 // pred_fallthru
      _
    %p101 = scmp.lt.s32.totalorder %s8, 2
    // Predicated region
    $region13: #{_lambda_.13} parent=5 // pred_check
      %p102 = pneg %p101
    $region14: #{_lambda_.13} parent=5 // pred_check_branch
      %104 = sbr.rel (%p102) target = $region16
    $region15: #{_lambda_.13} parent=5 // pred_region
      // Predicated region
      $region17: #{_lambda_.13} parent=15 // pred_check
        %p105 = pneg %p28
      $region18: #{_lambda_.13} parent=15 // pred_check_branch
        %107 = sbr.rel (%p105) target = $region20
      $region19: #{_lambda_.13} parent=15 // pred_region
        %p108 = scmp.lt.s32.totalorder %s8, 1
        %s109 = scalar_select %p108, %s8, 1
        %s110 = smul.addr %s109, 8
        %s111 = scalar_lea.vmem %s0, %s110
      $region20: #{_lambda_.13} parent=15 // pred_fallthru
        _
      // Predicated region
      $region21: #{_lambda_.13} parent=15 // pred_check
        %p112 = pneg %p54
      $region22: #{_lambda_.13} parent=15 // pred_check_branch
        %114 = sbr.rel (%p112) target = $region24
      $region23: #{_lambda_.13} parent=15 // pred_region
        %p115 = scmp.lt.s32.totalorder %s8, 1
        %s116 = scalar_select %p115, %s8, 1
        %s117 = scalar_lea.vmem %s1, %s116
      $region24: #{_lambda_.13} parent=15 // pred_fallthru
        _
    $region16: #{_lambda_.13} parent=5 // pred_fallthru
      _
    %p118 = scmp.le.s32.totalorder 1, %s8
    %p119 = scmp.lt.s32.totalorder %s8, 3
    %p120 = pnand %p118, %p119
    %p121 = pneg %p120
    // Predicated region
    $region25: #{_lambda_.13} parent=5 // pred_check
      _
    $region26: #{_lambda_.13} parent=5 // pred_check_branch
      %123 = sbr.rel (%p120) target = $region28
    $region27: #{_lambda_.13} parent=5 // pred_region
      %s124 = ssub.s32 %s8, 1
      %p125 = scmp.lt.s32.totalorder %s13, 1
      %s126 = scalar_select %p125, %s13, 1
      %s127 = smul.addr %s126, 8
      %s128 = scalar_lea.vmem %s0, %s127
      %p129 = pneg %p34
      %p130 = pneg %p31
      %p131 = scmp.lt.s32.totalorder %s13, 1
      %s132 = scalar_select %p131, %s13, 1
      %s133 = scalar_lea.vmem %s1, %s132
      %p134 = pneg %p60
      %p135 = pneg %p57
      %p136 = pneg %p86
      %p137 = pneg %p83
      %p138 = scmp.lt.s32.totalorder %s13, 1
      %s139 = scalar_select %p138, %s13, 1
      %s140 = smul.addr %s139, 8
      %s141 = scalar_lea.vmem %s2, %s140
      %p142 = scmp.lt.s32.totalorder %s13, 1
      %s143 = scalar_select %p142, %s13, 1
      %s144 = smul.addr %s143, 8
      %s145 = scalar_lea.vmem %s0, %s144
      %p146 = scmp.lt.s32.totalorder %s13, 1
      %s147 = scalar_select %p146, %s13, 1
      %s148 = scalar_lea.vmem %s1, %s147
      %p149 = scmp.lt.s32.totalorder %s13, 1
      %s150 = scalar_select %p149, %s13, 1
      %s151 = smul.addr %s150, 8
      %s152 = scalar_lea.vmem %s2, %s151
      %v154 = vld [vmem:[%s145] sm:$0xff]
      %v155 = vld [vmem:[%s148] sm:$0x1]
      %v156 = vpack.c.bf16 %v154, %v154
      %158 = vrot.lane.b32.xlu0 %v156, 96
      %v159 = vpop.permute.xlu0 %158
      %vm160 = vcmask 64512
      %v162 = vsel %vm160, %v156, 0
      %v165 = vsel %vm160, %v159, 0
      %167 = vmatprep.subr.bf16.mxu0 0
      %168 = vmatpush1.bf16.xpose.msra.mxu0 %v165
      %169 = vmatprep.subr.bf16.mxu0 0
      %170 = vmatpush1.bf16.xpose.msra.mxu0 0
      %171 = vmatprep.subr.bf16.mxu0 0
      %172 = vmatpush1.bf16.xpose.msra.mxu0 0
      %173 = vmatprep.subr.bf16.mxu0 0
      %174 = vmatpush1.bf16.xpose.msra.mxu0 0
      %175 = vmatprep.subr.bf16.mxu0 0
      %176 = vmatpush1.bf16.xpose.msra.mxu0 0
      %177 = vmatprep.subr.bf16.mxu0 0
      %178 = vmatpush1.bf16.xpose.msra.mxu0 0
      %179 = vmatprep.subr.bf16.mxu0 0
      %180 = vmatpush1.bf16.xpose.msra.mxu0 0
      %181 = vmatprep.subr.bf16.mxu0 0
      %182 = vmatpush1.bf16.xpose.msra.mxu0 0
      %183 = vmatprep.subr.bf16.mxu0 0
      %184 = vmatpush1.bf16.xpose.msra.mxu0 0
      %185 = vmatprep.subr.bf16.mxu0 0
      %186 = vmatpush1.bf16.xpose.msra.mxu0 0
      %187 = vmatprep.subr.bf16.mxu0 0
      %188 = vmatpush1.bf16.xpose.msra.mxu0 0
      %189 = vmatprep.subr.bf16.mxu0 0
      %190 = vmatpush1.bf16.xpose.msra.mxu0 0
      %191 = vmatprep.subr.bf16.mxu0 0
      %192 = vmatpush1.bf16.xpose.msra.mxu0 0
      %193 = vmatprep.subr.bf16.mxu0 0
      %194 = vmatpush1.bf16.xpose.msra.mxu0 0
      %195 = vmatprep.subr.bf16.mxu0 0
      %196 = vmatpush1.bf16.xpose.msra.mxu0 0
      %197 = vmatprep.subr.bf16.mxu0 0
      %198 = vmatpush1.bf16.xpose.msra.mxu0 0
      %199 = vmatprep.mubr.bf16.mxu0 0
      %200 = vmatmul.mubr.bf16.gmra.mrb[0].mxu0 %v162
      %v201 = vpop.f32.mrb[0].mxu0
      %v202 = vadd.f32 0.0, %v201
      %v203 = vpop.f32.mrb[0].mxu0
      %v204 = vpop.f32.mrb[0].mxu0
      %v205 = vpop.f32.mrb[0].mxu0
      %206 = vdwg.mxu0
      %v207 = vmul.f32 %v202, 0.35355338
      %v209 = vlaneseq
      %v210 = vshrl.u32 %v209, 7
      %v211 = vsub.s32 0, %v210
      %v212 = vrot.slane %v155, %v211
      %v214 = vadd.f32 %v207, %v212
      %v215 = vsel %vm160, %v214, -inf
      %216 = vmax.xlane.f32.xlu0 %v215
      %v217 = vpop.xlane.xlu0 %216
      %v218 = vsub.f32 %v214, %v217
      %v219 = vmul.f32 %v218, 1.442695
      %v220 = vpow.pop %v219
      %v221 = vsel %vm160, %v220, 0.0
      %222 = vadd.xlane.f32.xlu0 %v221
      %v223 = vpop.xlane.xlu0 %222
      %v224 = vrcp.pop %v223
      %v225 = vmul.f32 %v220, %v224
      %v226 = vpack.c.bf16 %v225, %v225
      %227 = vrot.lane.b32.xlu0 %v156, 64
      %v228 = vpop.permute.xlu0 %227
      %v230 = vsel %vm160, %v226, 0
      %vm232 = vcmask 1043456
      %v234 = vsel %vm232, %v228, 0
      %236 = vmatprep.subr.bf16.mxu0 0
      %237 = vmatpush1.bf16.msra.mxu0 %v234
      %238 = vmatprep.subr.bf16.mxu0 0
      %239 = vmatpush1.bf16.msra.mxu0 0
      %240 = vmatprep.subr.bf16.mxu0 0
      %241 = vmatpush1.bf16.msra.mxu0 0
      %242 = vmatprep.subr.bf16.mxu0 0
      %243 = vmatpush1.bf16.msra.mxu0 0
      %244 = vmatprep.subr.bf16.mxu0 0
      %245 = vmatpush1.bf16.msra.mxu0 0
      %246 = vmatprep.subr.bf16.mxu0 0
      %247 = vmatpush1.bf16.msra.mxu0 0
      %248 = vmatprep.subr.bf16.mxu0 0
      %249 = vmatpush1.bf16.msra.mxu0 0
      %250 = vmatprep.subr.bf16.mxu0 0
      %251 = vmatpush1.bf16.msra.mxu0 0
      %252 = vmatprep.subr.bf16.mxu0 0
      %253 = vmatpush1.bf16.msra.mxu0 0
      %254 = vmatprep.subr.bf16.mxu0 0
      %255 = vmatpush1.bf16.msra.mxu0 0
      %256 = vmatprep.subr.bf16.mxu0 0
      %257 = vmatpush1.bf16.msra.mxu0 0
      %258 = vmatprep.subr.bf16.mxu0 0
      %259 = vmatpush1.bf16.msra.mxu0 0
      %260 = vmatprep.subr.bf16.mxu0 0
      %261 = vmatpush1.bf16.msra.mxu0 0
      %262 = vmatprep.subr.bf16.mxu0 0
      %263 = vmatpush1.bf16.msra.mxu0 0
      %264 = vmatprep.subr.bf16.mxu0 0
      %265 = vmatpush1.bf16.msra.mxu0 0
      %266 = vmatprep.subr.bf16.mxu0 0
      %267 = vmatpush1.bf16.msra.mxu0 0
      %268 = vmatprep.mubr.bf16.mxu0 0
      %269 = vmatmul.mubr.bf16.gmra.mrb[0].mxu0 %v230
      %v270 = vpop.f32.mrb[0].mxu0
      %v271 = vadd.f32 0.0, %v270
      %v272 = vpop.f32.mrb[0].mxu0
      %v273 = vpop.f32.mrb[0].mxu0
      %v274 = vpop.f32.mrb[0].mxu0
      %275 = vdwg.mxu0
      %276 = vrot.lane.b32.xlu0 %v156, 120
      %v277 = vpop.permute.xlu0 %276
      %278 = vrot.lane.b32.xlu0 %v156, 88
      %v279 = vpop.permute.xlu0 %278
      %v281 = vsel %vm160, %v277, 0
      %v284 = vsel %vm160, %v279, 0
      %286 = vmatprep.subr.bf16.mxu0 0
      %287 = vmatpush1.bf16.xpose.msra.mxu0 %v284
      %288 = vmatprep.subr.bf16.mxu0 0
      %289 = vmatpush1.bf16.xpose.msra.mxu0 0
      %290 = vmatprep.subr.bf16.mxu0 0
      %291 = vmatpush1.bf16.xpose.msra.mxu0 0
      %292 = vmatprep.subr.bf16.mxu0 0
      %293 = vmatpush1.bf16.xpose.msra.mxu0 0
      %294 = vmatprep.subr.bf16.mxu0 0
      %295 = vmatpush1.bf16.xpose.msra.mxu0 0
      %296 = vmatprep.subr.bf16.mxu0 0
      %297 = vmatpush1.bf16.xpose.msra.mxu0 0
      %298 = vmatprep.subr.bf16.mxu0 0
      %299 = vmatpush1.bf16.xpose.msra.mxu0 0
      %300 = vmatprep.subr.bf16.mxu0 0
      %301 = vmatpush1.bf16.xpose.msra.mxu0 0
      %302 = vmatprep.subr.bf16.mxu0 0
      %303 = vmatpush1.bf16.xpose.msra.mxu0 0
      %304 = vmatprep.subr.bf16.mxu0 0
      %305 = vmatpush1.bf16.xpose.msra.mxu0 0
      %306 = vmatprep.subr.bf16.mxu0 0
      %307 = vmatpush1.bf16.xpose.msra.mxu0 0
      %308 = vmatprep.subr.bf16.mxu0 0
      %309 = vmatpush1.bf16.xpose.msra.mxu0 0
      %310 = vmatprep.subr.bf16.mxu0 0
      %311 = vmatpush1.bf16.xpose.msra.mxu0 0
      %312 = vmatprep.subr.bf16.mxu0 0
      %313 = vmatpush1.bf16.xpose.msra.mxu0 0
      %314 = vmatprep.subr.bf16.mxu0 0
      %315 = vmatpush1.bf16.xpose.msra.mxu0 0
      %316 = vmatprep.subr.bf16.mxu0 0
      %317 = vmatpush1.bf16.xpose.msra.mxu0 0
      %318 = vmatprep.mubr.bf16.mxu0 0
      %319 = vmatmul.mubr.bf16.gmra.mrb[0].mxu0 %v281
      %v320 = vpop.f32.mrb[0].mxu0
      %v321 = vadd.f32 0.0, %v320
      %v322 = vpop.f32.mrb[0].mxu0
      %v323 = vpop.f32.mrb[0].mxu0
      %v324 = vpop.f32.mrb[0].mxu0
      %325 = vdwg.mxu0
      %v326 = vmul.f32 %v321, 0.35355338
      %v327 = vadd.f32 %v326, %v212
      %v328 = vsel %vm160, %v327, -inf
      %329 = vmax.xlane.f32.xlu0 %v328
      %v330 = vpop.xlane.xlu0 %329
      %v331 = vsub.f32 %v327, %v330
      %v332 = vmul.f32 %v331, 1.442695
      %v333 = vpow.pop %v332
      %v334 = vsel %vm160, %v333, 0.0
      %335 = vadd.xlane.f32.xlu0 %v334
      %v336 = vpop.xlane.xlu0 %335
      %v337 = vrcp.pop %v336
      %v338 = vmul.f32 %v333, %v337
      %v339 = vpack.c.bf16 %v338, %v338
      %340 = vrot.lane.b32.xlu0 %v156, 56
      %v341 = vpop.permute.xlu0 %340
      %v343 = vsel %vm160, %v339, 0
      %v346 = vsel %vm232, %v341, 0
      %348 = vmatprep.subr.bf16.mxu0 0
      %349 = vmatpush1.bf16.msra.mxu0 %v346
      %350 = vmatprep.subr.bf16.mxu0 0
      %351 = vmatpush1.bf16.msra.mxu0 0
      %352 = vmatprep.subr.bf16.mxu0 0
      %353 = vmatpush1.bf16.msra.mxu0 0
      %354 = vmatprep.subr.bf16.mxu0 0
      %355 = vmatpush1.bf16.msra.mxu0 0
      %356 = vmatprep.subr.bf16.mxu0 0
      %357 = vmatpush1.bf16.msra.mxu0 0
      %358 = vmatprep.subr.bf16.mxu0 0
      %359 = vmatpush1.bf16.msra.mxu0 0
      %360 = vmatprep.subr.bf16.mxu0 0
      %361 = vmatpush1.bf16.msra.mxu0 0
      %362 = vmatprep.subr.bf16.mxu0 0
      %363 = vmatpush1.bf16.msra.mxu0 0
      %364 = vmatprep.subr.bf16.mxu0 0
      %365 = vmatpush1.bf16.msra.mxu0 0
      %366 = vmatprep.subr.bf16.mxu0 0
      %367 = vmatpush1.bf16.msra.mxu0 0
      %368 = vmatprep.subr.bf16.mxu0 0
      %369 = vmatpush1.bf16.msra.mxu0 0
      %370 = vmatprep.subr.bf16.mxu0 0
      %371 = vmatpush1.bf16.msra.mxu0 0
      %372 = vmatprep.subr.bf16.mxu0 0
      %373 = vmatpush1.bf16.msra.mxu0 0
      %374 = vmatprep.subr.bf16.mxu0 0
      %375 = vmatpush1.bf16.msra.mxu0 0
      %376 = vmatprep.subr.bf16.mxu0 0
      %377 = vmatpush1.bf16.msra.mxu0 0
      %378 = vmatprep.subr.bf16.mxu0 0
      %379 = vmatpush1.bf16.msra.mxu0 0
      %380 = vmatprep.mubr.bf16.mxu0 0
      %381 = vmatmul.mubr.bf16.gmra.mrb[0].mxu0 %v343
      %v382 = vpop.f32.mrb[0].mxu0
      %v383 = vadd.f32 0.0, %v382
      %v384 = vpop.f32.mrb[0].mxu0
      %v385 = vpop.f32.mrb[0].mxu0
      %v386 = vpop.f32.mrb[0].mxu0
      %387 = vdwg.mxu0
      %388 = vrot.lane.b32.xlu0 %v156, 112
      %v389 = vpop.permute.xlu0 %388
      %390 = vrot.lane.b32.xlu0 %v156, 80
      %v391 = vpop.permute.xlu0 %390
      %v393 = vsel %vm160, %v389, 0
      %v396 = vsel %vm160, %v391, 0
      %398 = vmatprep.subr.bf16.mxu0 0
      %399 = vmatpush1.bf16.xpose.msra.mxu0 %v396
      %400 = vmatprep.subr.bf16.mxu0 0
      %401 = vmatpush1.bf16.xpose.msra.mxu0 0
      %402 = vmatprep.subr.bf16.mxu0 0
      %403 = vmatpush1.bf16.xpose.msra.mxu0 0
      %404 = vmatprep.subr.bf16.mxu0 0
      %405 = vmatpush1.bf16.xpose.msra.mxu0 0
      %406 = vmatprep.subr.bf16.mxu0 0
      %407 = vmatpush1.bf16.xpose.msra.mxu0 0
      %408 = vmatprep.subr.bf16.mxu0 0
      %409 = vmatpush1.bf16.xpose.msra.mxu0 0
      %410 = vmatprep.subr.bf16.mxu0 0
      %411 = vmatpush1.bf16.xpose.msra.mxu0 0
      %412 = vmatprep.subr.bf16.mxu0 0
      %413 = vmatpush1.bf16.xpose.msra.mxu0 0
      %414 = vmatprep.subr.bf16.mxu0 0
      %415 = vmatpush1.bf16.xpose.msra.mxu0 0
      %416 = vmatprep.subr.bf16.mxu0 0
      %417 = vmatpush1.bf16.xpose.msra.mxu0 0
      %418 = vmatprep.subr.bf16.mxu0 0
      %419 = vmatpush1.bf16.xpose.msra.mxu0 0
      %420 = vmatprep.subr.bf16.mxu0 0
      %421 = vmatpush1.bf16.xpose.msra.mxu0 0
      %422 = vmatprep.subr.bf16.mxu0 0
      %423 = vmatpush1.bf16.xpose.msra.mxu0 0
      %424 = vmatprep.subr.bf16.mxu0 0
      %425 = vmatpush1.bf16.xpose.msra.mxu0 0
      %426 = vmatprep.subr.bf16.mxu0 0
      %427 = vmatpush1.bf16.xpose.msra.mxu0 0
      %428 = vmatprep.subr.bf16.mxu0 0
      %429 = vmatpush1.bf16.xpose.msra.mxu0 0
      %430 = vmatprep.mubr.bf16.mxu0 0
      %431 = vmatmul.mubr.bf16.gmra.mrb[0].mxu0 %v393
      %v432 = vpop.f32.mrb[0].mxu0
      %v433 = vadd.f32 0.0, %v432
      %v434 = vpop.f32.mrb[0].mxu0
      %v435 = vpop.f32.mrb[0].mxu0
      %v436 = vpop.f32.mrb[0].mxu0
      %437 = vdwg.mxu0
      %v438 = vmul.f32 %v433, 0.35355338
      %v439 = vadd.f32 %v438, %v212
      %v440 = vsel %vm160, %v439, -inf
      %441 = vmax.xlane.f32.xlu0 %v440
      %v442 = vpop.xlane.xlu0 %441
      %v443 = vsub.f32 %v439, %v442
      %v444 = vmul.f32 %v443, 1.442695
      %v445 = vpow.pop %v444
      %v446 = vsel %vm160, %v445, 0.0
      %447 = vadd.xlane.f32.xlu0 %v446
      %v448 = vpop.xlane.xlu0 %447
      %v449 = vrcp.pop %v448
      %v450 = vmul.f32 %v445, %v449
      %v451 = vpack.c.bf16 %v450, %v450
      %452 = vrot.lane.b32.xlu0 %v156, 48
      %v453 = vpop.permute.xlu0 %452
      %v455 = vsel %vm160, %v451, 0
      %v458 = vsel %vm232, %v453, 0
      %460 = vmatprep.subr.bf16.mxu0 0
      %461 = vmatpush1.bf16.msra.mxu0 %v458
      %462 = vmatprep.subr.bf16.mxu0 0
      %463 = vmatpush1.bf16.msra.mxu0 0
      %464 = vmatprep.subr.bf16.mxu0 0
      %465 = vmatpush1.bf16.msra.mxu0 0
      %466 = vmatprep.subr.bf16.mxu0 0
      %467 = vmatpush1.bf16.msra.mxu0 0
      %468 = vmatprep.subr.bf16.mxu0 0
      %469 = vmatpush1.bf16.msra.mxu0 0
      %470 = vmatprep.subr.bf16.mxu0 0
      %471 = vmatpush1.bf16.msra.mxu0 0
      %472 = vmatprep.subr.bf16.mxu0 0
      %473 = vmatpush1.bf16.msra.mxu0 0
      %474 = vmatprep.subr.bf16.mxu0 0
      %475 = vmatpush1.bf16.msra.mxu0 0
      %476 = vmatprep.subr.bf16.mxu0 0
      %477 = vmatpush1.bf16.msra.mxu0 0
      %478 = vmatprep.subr.bf16.mxu0 0
      %479 = vmatpush1.bf16.msra.mxu0 0
      %480 = vmatprep.subr.bf16.mxu0 0
      %481 = vmatpush1.bf16.msra.mxu0 0
      %482 = vmatprep.subr.bf16.mxu0 0
      %483 = vmatpush1.bf16.msra.mxu0 0
      %484 = vmatprep.subr.bf16.mxu0 0
      %485 = vmatpush1.bf16.msra.mxu0 0
      %486 = vmatprep.subr.bf16.mxu0 0
      %487 = vmatpush1.bf16.msra.mxu0 0
      %488 = vmatprep.subr.bf16.mxu0 0
      %489 = vmatpush1.bf16.msra.mxu0 0
      %490 = vmatprep.subr.bf16.mxu0 0
      %491 = vmatpush1.bf16.msra.mxu0 0
      %492 = vmatprep.mubr.bf16.mxu0 0
      %493 = vmatmul.mubr.bf16.gmra.mrb[0].mxu0 %v455
      %v494 = vpop.f32.mrb[0].mxu0
      %v495 = vadd.f32 0.0, %v494
      %v496 = vpop.f32.mrb[0].mxu0
      %v497 = vpop.f32.mrb[0].mxu0
      %v498 = vpop.f32.mrb[0].mxu0
      %499 = vdwg.mxu0
      %500 = vrot.lane.b32.xlu0 %v156, 104
      %v501 = vpop.permute.xlu0 %500
      %502 = vrot.lane.b32.xlu0 %v156, 72
      %v503 = vpop.permute.xlu0 %502
      %v505 = vsel %vm160, %v501, 0
      %v508 = vsel %vm160, %v503, 0
      %510 = vmatprep.subr.bf16.mxu0 0
      %511 = vmatpush1.bf16.xpose.msra.mxu0 %v508
      %512 = vmatprep.subr.bf16.mxu0 0
      %513 = vmatpush1.bf16.xpose.msra.mxu0 0
      %514 = vmatprep.subr.bf16.mxu0 0
      %515 = vmatpush1.bf16.xpose.msra.mxu0 0
      %516 = vmatprep.subr.bf16.mxu0 0
      %517 = vmatpush1.bf16.xpose.msra.mxu0 0
      %518 = vmatprep.subr.bf16.mxu0 0
      %519 = vmatpush1.bf16.xpose.msra.mxu0 0
      %520 = vmatprep.subr.bf16.mxu0 0
      %521 = vmatpush1.bf16.xpose.msra.mxu0 0
      %522 = vmatprep.subr.bf16.mxu0 0
      %523 = vmatpush1.bf16.xpose.msra.mxu0 0
      %524 = vmatprep.subr.bf16.mxu0 0
      %525 = vmatpush1.bf16.xpose.msra.mxu0 0
      %526 = vmatprep.subr.bf16.mxu0 0
      %527 = vmatpush1.bf16.xpose.msra.mxu0 0
      %528 = vmatprep.subr.bf16.mxu0 0
      %529 = vmatpush1.bf16.xpose.msra.mxu0 0
      %530 = vmatprep.subr.bf16.mxu0 0
      %531 = vmatpush1.bf16.xpose.msra.mxu0 0
      %532 = vmatprep.subr.bf16.mxu0 0
      %533 = vmatpush1.bf16.xpose.msra.mxu0 0
      %534 = vmatprep.subr.bf16.mxu0 0
      %535 = vmatpush1.bf16.xpose.msra.mxu0 0
      %536 = vmatprep.subr.bf16.mxu0 0
      %537 = vmatpush1.bf16.xpose.msra.mxu0 0
      %538 = vmatprep.subr.bf16.mxu0 0
      %539 = vmatpush1.bf16.xpose.msra.mxu0 0
      %540 = vmatprep.subr.bf16.mxu0 0
      %541 = vmatpush1.bf16.xpose.msra.mxu0 0
      %542 = vmatprep.mubr.bf16.mxu0 0
      %543 = vmatmul.mubr.bf16.gmra.mrb[0].mxu0 %v505
      %v544 = vpop.f32.mrb[0].mxu0
      %v545 = vadd.f32 0.0, %v544
      %v546 = vpop.f32.mrb[0].mxu0
      %v547 = vpop.f32.mrb[0].mxu0
      %v548 = vpop.f32.mrb[0].mxu0
      %549 = vdwg.mxu0
      %v550 = vmul.f32 %v545, 0.35355338
      %v551 = vadd.f32 %v550, %v212
      %v552 = vsel %vm160, %v551, -inf
      %553 = vmax.xlane.f32.xlu0 %v552
      %v554 = vpop.xlane.xlu0 %553
      %v555 = vsub.f32 %v551, %v554
      %v556 = vmul.f32 %v555, 1.442695
      %v557 = vpow.pop %v556
      %v558 = vsel %vm160, %v557, 0.0
      %559 = vadd.xlane.f32.xlu0 %v558
      %v560 = vpop.xlane.xlu0 %559
      %v561 = vrcp.pop %v560
      %v562 = vmul.f32 %v557, %v561
      %v563 = vpack.c.bf16 %v562, %v562
      %564 = vrot.lane.b32.xlu0 %v156, 40
      %v565 = vpop.permute.xlu0 %564
      %v567 = vsel %vm160, %v563, 0
      %v570 = vsel %vm232, %v565, 0
      %572 = vmatprep.subr.bf16.mxu0 0
      %573 = vmatpush1.bf16.msra.mxu0 %v570
      %574 = vmatprep.subr.bf16.mxu0 0
      %575 = vmatpush1.bf16.msra.mxu0 0
      %576 = vmatprep.subr.bf16.mxu0 0
      %577 = vmatpush1.bf16.msra.mxu0 0
      %578 = vmatprep.subr.bf16.mxu0 0
      %579 = vmatpush1.bf16.msra.mxu0 0
      %580 = vmatprep.subr.bf16.mxu0 0
      %581 = vmatpush1.bf16.msra.mxu0 0
      %582 = vmatprep.subr.bf16.mxu0 0
      %583 = vmatpush1.bf16.msra.mxu0 0
      %584 = vmatprep.subr.bf16.mxu0 0
      %585 = vmatpush1.bf16.msra.mxu0 0
      %586 = vmatprep.subr.bf16.mxu0 0
      %587 = vmatpush1.bf16.msra.mxu0 0
      %588 = vmatprep.subr.bf16.mxu0 0
      %589 = vmatpush1.bf16.msra.mxu0 0
      %590 = vmatprep.subr.bf16.mxu0 0
      %591 = vmatpush1.bf16.msra.mxu0 0
      %592 = vmatprep.subr.bf16.mxu0 0
      %593 = vmatpush1.bf16.msra.mxu0 0
      %594 = vmatprep.subr.bf16.mxu0 0
      %595 = vmatpush1.bf16.msra.mxu0 0
      %596 = vmatprep.subr.bf16.mxu0 0
      %597 = vmatpush1.bf16.msra.mxu0 0
      %598 = vmatprep.subr.bf16.mxu0 0
      %599 = vmatpush1.bf16.msra.mxu0 0
      %600 = vmatprep.subr.bf16.mxu0 0
      %601 = vmatpush1.bf16.msra.mxu0 0
      %602 = vmatprep.subr.bf16.mxu0 0
      %603 = vmatpush1.bf16.msra.mxu0 0
      %604 = vmatprep.mubr.bf16.mxu0 0
      %605 = vmatmul.mubr.bf16.gmra.mrb[0].mxu0 %v567
      %v606 = vpop.f32.mrb[0].mxu0
      %v607 = vadd.f32 0.0, %v606
      %v608 = vpop.f32.mrb[0].mxu0
      %v609 = vpop.f32.mrb[0].mxu0
      %v610 = vpop.f32.mrb[0].mxu0
      %611 = vdwg.mxu0
      %613 = vrot.lane.b32.xlu0 %v383, 8
      %v614 = vpop.permute.xlu0 %613
      %617 = vrot.lane.b32.xlu0 %v495, 16
      %v618 = vpop.permute.xlu0 %617
      %621 = vrot.lane.b32.xlu0 %v607, 24
      %v622 = vpop.permute.xlu0 %621
      %v624 = vsel %vm160, %v271, %v614
      %vm625 = vcmask 130048
      %v626 = vsel %vm625, %v624, %v618
      %vm627 = vcmask 195584
      %v628 = vsel %vm627, %v626, %v622
      %vm629 = vcmask 261120
      %630 = vst.msk [vmem:[%s152] sm:$0xff] %vm629, %v628
      %p631 = scmp.lt.s32.totalorder %s13, 1
      %s632 = scalar_select %p631, %s13, 1
      %s633 = smul.addr %s632, 8
      %s634 = scalar_lea.vmem %s2, %s633
      // Predicated region
      $region29: #{_lambda_.13} parent=27 // pred_check
        %p635 = pneg %p83
      $region30: #{_lambda_.13} parent=27 // pred_check_branch
        %637 = sbr.rel (%p635) target = $region32
      $region31: #{_lambda_.13} parent=27 // pred_region
        _
      $region32: #{_lambda_.13} parent=27 // pred_fallthru
        _
    $region28: #{_lambda_.13} parent=5 // pred_fallthru
      _
    %p638 = scmp.le.s32.totalorder 2, %s8
    // Predicated region
    $region33: #{_lambda_.13} parent=5 // pred_check
      %p639 = pneg %p638
    $region34: #{_lambda_.13} parent=5 // pred_check_branch
      %641 = sbr.rel (%p639) target = $region36
    $region35: #{_lambda_.13} parent=5 // pred_region
      %s642 = ssub.s32 %s8, 2
      // Predicated region
      $region37: #{_lambda_.13} parent=35 // pred_check
        %p643 = pneg %p89
      $region38: #{_lambda_.13} parent=35 // pred_check_branch
        %645 = sbr.rel (%p643) target = $region40
      $region39: #{_lambda_.13} parent=35 // pred_region
        %p646 = scmp.lt.s32.totalorder %s14, 1
        %s647 = scalar_select %p646, %s14, 1
        %s648 = smul.addr %s647, 8
        %s649 = scalar_lea.vmem %s2, %s648
      $region40: #{_lambda_.13} parent=35 // pred_fallthru
        _
    $region36: #{_lambda_.13} parent=5 // pred_fallthru
      _
  $region6: #{_lambda_.13} parent=0 // loop_footer
    %s12 = sadd.s32 1, %s8
  $region7: #{_lambda_.13} parent=0 // loop_footer_branch
    %7 = sbr.rel target = $region3
  $region8: #{_lambda_.13} parent=0 // loop_exit
    _

// kernel: _lambda_.15
$region0: #{_lambda_.15}
  #allocation0 [shape = 'u32[]', space=smem, size = 0x4, offset = 0x4, fixed_abs, tag = 'smem constant byte address 0x4 - core index']
  #allocation1 [shape = 'u32[144,128]{1,0:T(1,128)}', space=vmem, size = 0x12000, scoped, tag = 'internal scratch']
  #allocation2 [shape = 'f32[16,64]{1,0:T(8,128)}', space=vmem, size = 0x2000, scoped, tag = 'scratch operand']
  %s0 = inlined_call_operand.vmem [shape: f32[16,32], index: 0, kind: input, shape index: {}]
  %s1 = inlined_call_operand.vmem [shape: f32[32,64], index: 1, kind: input, shape index: {}]
  %s2 = inlined_call_operand.vmem [shape: f32[1,64], index: 2, kind: input, shape index: {}]
  %s3 = inlined_call_operand.vmem [shape: f32[16,64], index: 3, kind: output, shape index: {}]
  %s4 = sld [smem:[#allocation0]]
  $region30: #{_lambda_.15} parent=0
    _
  %s6 = ssub.s32 1, %s4
  %s7 = scalar_select 0, %s6, %s4
  // Predicated region
  $region2: #{_lambda_.15} parent=0 // pred_check
    _
  $region3: #{_lambda_.15} parent=0 // pred_check_branch
    %9 = sbr.rel (0) target = $region5
  $region4: #{_lambda_.15} parent=0 // pred_region
    _
  $region5: #{_lambda_.15} parent=0 // pred_fallthru
    _
  // Predicated region
  $region6: #{_lambda_.15} parent=0 // pred_check
    _
  $region7: #{_lambda_.15} parent=0 // pred_check_branch
    %11 = sbr.rel (0) target = $region9
  $region8: #{_lambda_.15} parent=0 // pred_region
    _
  $region9: #{_lambda_.15} parent=0 // pred_fallthru
    _
  // Predicated region
  $region10: #{_lambda_.15} parent=0 // pred_check
    _
  $region11: #{_lambda_.15} parent=0 // pred_check_branch
    %13 = sbr.rel (0) target = $region13
  $region12: #{_lambda_.15} parent=0 // pred_region
    _
  $region13: #{_lambda_.15} parent=0 // pred_fallthru
    _
  %p15 = scmp.eq.s32.totalorder 0, 0
  // Predicated region
  $region14: #{_lambda_.15} parent=0 // pred_check
    %p16 = pneg %p15
  $region15: #{_lambda_.15} parent=0 // pred_check_branch
    %18 = sbr.rel (%p16) target = $region17
  $region16: #{_lambda_.15} parent=0 // pred_region
    %vm19 = vcmask 523264
    %20 = vst.msk [vmem:[#allocation2] sm:$0xff] %vm19, 0.0
    %21 = vst.msk [vmem:[#allocation2 + $0x8] sm:$0xff] %vm19, 0.0
  $region17: #{_lambda_.15} parent=0 // pred_fallthru
    _
  %v22 = vld [vmem:[#allocation2] sm:$0xff]
  %v23 = vld [vmem:[#allocation2 + $0x8] sm:$0xff]
  %v24 = vld [vmem:[%s0] sm:$0xff]
  %v25 = vld [vmem:[%s0 + $0x8] sm:$0xff]
  %v26 = vpack.c.bf16 %v25, %v24
  %v27 = vld [vmem:[%s1] sm:$0xff]
  %v28 = vld [vmem:[%s1 + $0x8] sm:$0xff]
  %v29 = vld [vmem:[%s1 + $0x10] sm:$0xff]
  %v30 = vld [vmem:[%s1 + $0x18] sm:$0xff]
  %v31 = vpack.c.bf16 %v28, %v27
  %v32 = vpack.c.bf16 %v30, %v29
  %vm33 = vcmask 261120
  %v35 = vsel %vm33, %v26, 0
  %37 = vmatprep.subr.bf16.mxu0 0
  %38 = vmatpush1.bf16.msra.mxu0 %v31
  %39 = vmatprep.subr.bf16.mxu0 0
  %40 = vmatpush1.bf16.msra.mxu0 %v32
  %41 = vmatprep.subr.bf16.mxu0 0
  %42 = vmatpush1.bf16.msra.mxu0 0
  %43 = vmatprep.subr.bf16.mxu0 0
  %44 = vmatpush1.bf16.msra.mxu0 0
  %45 = vmatprep.subr.bf16.mxu0 0
  %46 = vmatpush1.bf16.msra.mxu0 0
  %47 = vmatprep.subr.bf16.mxu0 0
  %48 = vmatpush1.bf16.msra.mxu0 0
  %49 = vmatprep.subr.bf16.mxu0 0
  %50 = vmatpush1.bf16.msra.mxu0 0
  %51 = vmatprep.subr.bf16.mxu0 0
  %52 = vmatpush1.bf16.msra.mxu0 0
  %53 = vmatprep.subr.bf16.mxu0 0
  %54 = vmatpush1.bf16.msra.mxu0 0
  %55 = vmatprep.subr.bf16.mxu0 0
  %56 = vmatpush1.bf16.msra.mxu0 0
  %57 = vmatprep.subr.bf16.mxu0 0
  %58 = vmatpush1.bf16.msra.mxu0 0
  %59 = vmatprep.subr.bf16.mxu0 0
  %60 = vmatpush1.bf16.msra.mxu0 0
  %61 = vmatprep.subr.bf16.mxu0 0
  %62 = vmatpush1.bf16.msra.mxu0 0
  %63 = vmatprep.subr.bf16.mxu0 0
  %64 = vmatpush1.bf16.msra.mxu0 0
  %65 = vmatprep.subr.bf16.mxu0 0
  %66 = vmatpush1.bf16.msra.mxu0 0
  %67 = vmatprep.subr.bf16.mxu0 0
  %68 = vmatpush1.bf16.msra.mxu0 0
  %69 = vmatprep.mubr.bf16.mxu0 0
  %70 = vmatmul.mubr.bf16.gmra.mrb[0].mxu0 %v35
  %v71 = vpop.f32.mrb[0].mxu0
  %v72 = vadd.f32 0.0, %v71
  %v73 = vpop.f32.mrb[0].mxu0
  %v74 = vpop.f32.mrb[0].mxu0
  %v75 = vadd.f32 0.0, %v74
  %v76 = vpop.f32.mrb[0].mxu0
  %77 = vdwg.mxu0
  %v78 = vadd.f32 %v22, %v72
  %v79 = vadd.f32 %v23, %v75
  %vm80 = vcmask 523264
  %81 = vst.msk [vmem:[#allocation2] sm:$0xff] %vm80, %v78
  %82 = vst.msk [vmem:[#allocation2 + $0x8] sm:$0xff] %vm80, %v79
  // Predicated region
  $region18: #{_lambda_.15} parent=0 // pred_check
    %p83 = pneg %p15
  $region19: #{_lambda_.15} parent=0 // pred_check_branch
    %85 = sbr.rel (%p83) target = $region21
  $region20: #{_lambda_.15} parent=0 // pred_region
    %v86 = vld [vmem:[#allocation2] sm:$0xff]
    %v87 = vld [vmem:[#allocation2 + $0x8] sm:$0xff]
    %v88 = vld [vmem:[%s2] sm:$0x1]
    %v90 = vlaneseq
    %v91 = vshrl.u32 %v90, 7
    %v92 = vsub.s32 0, %v91
    %v93 = vrot.slane %v88, %v92
    %v95 = vadd.f32 %v86, %v93
    %v96 = vadd.f32 %v87, %v93
    %v97 = vmul.f32 %v95, 0.5
    %v98 = vmul.f32 %v96, 0.5
    %v99 = vmul.f32 %v95, 0.70710677
    %v100 = vmul.f32 %v96, 0.70710677
    %v101 = verf.f32.pop %v99
    %v102 = verf.f32.pop %v100
    %v103 = vadd.f32 %v101, 1.0
    %v104 = vadd.f32 %v102, 1.0
    %v105 = vmul.f32 %v97, %v103
    %v106 = vmul.f32 %v98, %v104
    %107 = vst.msk [vmem:[%s3] sm:$0xff] %vm80, %v105
    %108 = vst.msk [vmem:[%s3 + $0x8] sm:$0xff] %vm80, %v106
  $region21: #{_lambda_.15} parent=0 // pred_fallthru
    _
  // Predicated region
  $region22: #{_lambda_.15} parent=0 // pred_check
    _
  $region23: #{_lambda_.15} parent=0 // pred_check_branch
    %110 = sbr.rel (0) target = $region25
  $region24: #{_lambda_.15} parent=0 // pred_region
    _
  $region25: #{_lambda_.15} parent=0 // pred_fallthru
    _
  // Predicated region
  $region26: #{_lambda_.15} parent=0 // pred_check
    _
  $region27: #{_lambda_.15} parent=0 // pred_check_branch
    %112 = sbr.rel (0) target = $region29
  $region28: #{_lambda_.15} parent=0 // pred_region
    _
  $region29: #{_lambda_.15} parent=0 // pred_fallthru
    _

// kernel: _lambda_.21
$region0: #{_lambda_.21}
  #allocation0 [shape = 'u32[]', space=smem, size = 0x4, offset = 0x4, fixed_abs, tag = 'smem constant byte address 0x4 - core index']
  #allocation1 [shape = 'u32[144,128]{1,0:T(1,128)}', space=vmem, size = 0x12000, scoped, tag = 'internal scratch']
  #allocation2 [shape = 'f32[16,32]{1,0:T(8,128)}', space=vmem, size = 0x2000, scoped, tag = 'scratch operand']
  %s0 = inlined_call_operand.vmem [shape: f32[16,64], index: 0, kind: input, shape index: {}]
  %s1 = inlined_call_operand.vmem [shape: f32[64,32], index: 1, kind: input, shape index: {}]
  %s2 = inlined_call_operand.vmem [shape: f32[1,32], index: 2, kind: input, shape index: {}]
  %s3 = inlined_call_operand.vmem [shape: f32[16,32], index: 3, kind: input, shape index: {}]
  %s4 = inlined_call_operand.vmem [shape: f32[1,32], index: 4, kind: input, shape index: {}]
  %s5 = inlined_call_operand.vmem [shape: f32[1,32], index: 5, kind: input, shape index: {}]
  %s6 = inlined_call_operand.hbm [shape: f32[16,32], index: 6, kind: output, shape index: {}]
  %s7 = sld [smem:[#allocation0]]
  $region42: #{_lambda_.21} parent=0
    _
  %s9 = ssub.s32 1, %s7
  %s10 = scalar_select 0, %s9, %s7
  $region1: #{_lambda_.21} parent=0
    #allocation3 [shape = 'u8[8192]{0}', space=vmem, size = 0x2000, scoped, tag = 'output window, operand 0, single buffered']
    #allocation4 [shape = 's32[1]{0}', space=sflag, size = 0x4, scoped, tag = 'scoped memory for _lambda_.21']
    %11 = vsyncpa [#allocation4], 0
    // Predicated region
    $region2: #{_lambda_.21} parent=1 // pred_check
      _
    $region3: #{_lambda_.21} parent=1 // pred_check_branch
      %13 = sbr.rel (0) target = $region5
    $region4: #{_lambda_.21} parent=1 // pred_region
      _
    $region5: #{_lambda_.21} parent=1 // pred_fallthru
      _
    // Predicated region
    $region6: #{_lambda_.21} parent=1 // pred_check
      _
    $region7: #{_lambda_.21} parent=1 // pred_check_branch
      %15 = sbr.rel (0) target = $region9
    $region8: #{_lambda_.21} parent=1 // pred_region
      _
    $region9: #{_lambda_.21} parent=1 // pred_fallthru
      _
    // Predicated region
    $region10: #{_lambda_.21} parent=1 // pred_check
      _
    $region11: #{_lambda_.21} parent=1 // pred_check_branch
      %17 = sbr.rel (0) target = $region13
    $region12: #{_lambda_.21} parent=1 // pred_region
      _
    $region13: #{_lambda_.21} parent=1 // pred_fallthru
      _
    // Predicated region
    $region14: #{_lambda_.21} parent=1 // pred_check
      _
    $region15: #{_lambda_.21} parent=1 // pred_check_branch
      %19 = sbr.rel (0) target = $region17
    $region16: #{_lambda_.21} parent=1 // pred_region
      _
    $region17: #{_lambda_.21} parent=1 // pred_fallthru
      _
    // Predicated region
    $region18: #{_lambda_.21} parent=1 // pred_check
      _
    $region19: #{_lambda_.21} parent=1 // pred_check_branch
      %21 = sbr.rel (0) target = $region21
    $region20: #{_lambda_.21} parent=1 // pred_region
      _
    $region21: #{_lambda_.21} parent=1 // pred_fallthru
      _
    // Predicated region
    $region22: #{_lambda_.21} parent=1 // pred_check
      _
    $region23: #{_lambda_.21} parent=1 // pred_check_branch
      %23 = sbr.rel (0) target = $region25
    $region24: #{_lambda_.21} parent=1 // pred_region
      _
    $region25: #{_lambda_.21} parent=1 // pred_fallthru
      _
    %p25 = scmp.eq.s32.totalorder 0, 0
    // Predicated region
    $region26: #{_lambda_.21} parent=1 // pred_check
      %p26 = pneg %p25
    $region27: #{_lambda_.21} parent=1 // pred_check_branch
      %28 = sbr.rel (%p26) target = $region29
    $region28: #{_lambda_.21} parent=1 // pred_region
      %vm29 = vcmask 261120
      %30 = vst.msk [vmem:[#allocation2] sm:$0xff] %vm29, 0.0
      %31 = vst.msk [vmem:[#allocation2 + $0x8] sm:$0xff] %vm29, 0.0
    $region29: #{_lambda_.21} parent=1 // pred_fallthru
      _
    %v32 = vld [vmem:[#allocation2] sm:$0xff]
    %v33 = vld [vmem:[#allocation2 + $0x8] sm:$0xff]
    %v34 = vld [vmem:[%s0] sm:$0xff]
    %v35 = vld [vmem:[%s0 + $0x8] sm:$0xff]
    %v36 = vpack.c.bf16 %v35, %v34
    %v37 = vld [vmem:[%s1] sm:$0xff]
    %v38 = vld [vmem:[%s1 + $0x8] sm:$0xff]
    %v39 = vld [vmem:[%s1 + $0x10] sm:$0xff]
    %v40 = vld [vmem:[%s1 + $0x18] sm:$0xff]
    %v41 = vld [vmem:[%s1 + $0x20] sm:$0xff]
    %v42 = vld [vmem:[%s1 + $0x28] sm:$0xff]
    %v43 = vld [vmem:[%s1 + $0x30] sm:$0xff]
    %v44 = vld [vmem:[%s1 + $0x38] sm:$0xff]
    %v45 = vpack.c.bf16 %v38, %v37
    %v46 = vpack.c.bf16 %v40, %v39
    %v47 = vpack.c.bf16 %v42, %v41
    %v48 = vpack.c.bf16 %v44, %v43
    %vm49 = vcmask 523264
    %v51 = vsel %vm49, %v36, 0
    %53 = vmatprep.subr.bf16.mxu0 0
    %54 = vmatpush1.bf16.msra.mxu0 %v45
    %55 = vmatprep.subr.bf16.mxu0 0
    %56 = vmatpush1.bf16.msra.mxu0 %v46
    %57 = vmatprep.subr.bf16.mxu0 0
    %58 = vmatpush1.bf16.msra.mxu0 %v47
    %59 = vmatprep.subr.bf16.mxu0 0
    %60 = vmatpush1.bf16.msra.mxu0 %v48
    %61 = vmatprep.subr.bf16.mxu0 0
    %62 = vmatpush1.bf16.msra.mxu0 0
    %63 = vmatprep.subr.bf16.mxu0 0
    %64 = vmatpush1.bf16.msra.mxu0 0
    %65 = vmatprep.subr.bf16.mxu0 0
    %66 = vmatpush1.bf16.msra.mxu0 0
    %67 = vmatprep.subr.bf16.mxu0 0
    %68 = vmatpush1.bf16.msra.mxu0 0
    %69 = vmatprep.subr.bf16.mxu0 0
    %70 = vmatpush1.bf16.msra.mxu0 0
    %71 = vmatprep.subr.bf16.mxu0 0
    %72 = vmatpush1.bf16.msra.mxu0 0
    %73 = vmatprep.subr.bf16.mxu0 0
    %74 = vmatpush1.bf16.msra.mxu0 0
    %75 = vmatprep.subr.bf16.mxu0 0
    %76 = vmatpush1.bf16.msra.mxu0 0
    %77 = vmatprep.subr.bf16.mxu0 0
    %78 = vmatpush1.bf16.msra.mxu0 0
    %79 = vmatprep.subr.bf16.mxu0 0
    %80 = vmatpush1.bf16.msra.mxu0 0
    %81 = vmatprep.subr.bf16.mxu0 0
    %82 = vmatpush1.bf16.msra.mxu0 0
    %83 = vmatprep.subr.bf16.mxu0 0
    %84 = vmatpush1.bf16.msra.mxu0 0
    %85 = vmatprep.mubr.bf16.mxu0 0
    %86 = vmatmul.mubr.bf16.gmra.mrb[0].mxu0 %v51
    %v87 = vpop.f32.mrb[0].mxu0
    %v88 = vadd.f32 0.0, %v87
    %v89 = vpop.f32.mrb[0].mxu0
    %v90 = vpop.f32.mrb[0].mxu0
    %v91 = vadd.f32 0.0, %v90
    %v92 = vpop.f32.mrb[0].mxu0
    %93 = vdwg.mxu0
    %v94 = vadd.f32 %v32, %v88
    %v95 = vadd.f32 %v33, %v91
    %vm96 = vcmask 261120
    %97 = vst.msk [vmem:[#allocation2] sm:$0xff] %vm96, %v94
    %98 = vst.msk [vmem:[#allocation2 + $0x8] sm:$0xff] %vm96, %v95
    // Predicated region
    $region30: #{_lambda_.21} parent=1 // pred_check
      %p99 = pneg %p25
    $region31: #{_lambda_.21} parent=1 // pred_check_branch
      %101 = sbr.rel (%p99) target = $region33
    $region32: #{_lambda_.21} parent=1 // pred_region
      %v102 = vld [vmem:[#allocation2] sm:$0xff]
      %v103 = vld [vmem:[#allocation2 + $0x8] sm:$0xff]
      %v104 = vld [vmem:[%s2] sm:$0x1]
      %v106 = vlaneseq
      %v107 = vshrl.u32 %v106, 7
      %v108 = vsub.s32 0, %v107
      %v109 = vrot.slane %v104, %v108
      %v111 = vadd.f32 %v102, %v109
      %v112 = vadd.f32 %v103, %v109
      %v113 = vld [vmem:[%s3] sm:$0xff]
      %v114 = vld [vmem:[%s3 + $0x8] sm:$0xff]
      %v115 = vadd.f32 %v111, %v113
      %v116 = vadd.f32 %v112, %v114
      %v117 = vsel %vm96, %v115, 0.0
      %118 = vadd.xlane.f32.xlu0 %v117
      %v119 = vpop.xlane.xlu0 %118
      %v120 = vsel %vm96, %v116, 0.0
      %121 = vadd.xlane.f32.xlu0 %v120
      %v122 = vpop.xlane.xlu0 %121
      %v123 = vrcp.pop 32.0
      %v124 = vmul.f32 %v119, %v123
      %v125 = vmul.f32 %v122, %v123
      %v126 = vsub.f32 %v115, %v124
      %v127 = vsub.f32 %v116, %v125
      %v128 = vmul.f32 %v126, %v126
      %v129 = vmul.f32 %v127, %v127
      %v130 = vsel %vm96, %v128, 0.0
      %131 = vadd.xlane.f32.xlu0 %v130
      %v132 = vpop.xlane.xlu0 %131
      %v133 = vsel %vm96, %v129, 0.0
      %134 = vadd.xlane.f32.xlu0 %v133
      %v135 = vpop.xlane.xlu0 %134
      %v136 = vmul.f32 %v132, %v123
      %v137 = vmul.f32 %v135, %v123
      %v138 = vadd.f32 %v136, 1e-12
      %v139 = vadd.f32 %v137, 1e-12
      %v140 = vrsqrt.pop %v138
      %v141 = vrsqrt.pop %v139
      %v142 = vmul.f32 %v126, %v140
      %v143 = vmul.f32 %v127, %v141
      %v144 = vld [vmem:[%s4] sm:$0x1]
      %v146 = vlaneseq
      %v147 = vshrl.u32 %v146, 7
      %v148 = vsub.s32 0, %v147
      %v149 = vrot.slane %v144, %v148
      %v151 = vmul.f32 %v142, %v149
      %v152 = vmul.f32 %v143, %v149
      %v153 = vld [vmem:[%s5] sm:$0x1]
      %v155 = vlaneseq
      %v156 = vshrl.u32 %v155, 7
      %v157 = vsub.s32 0, %v156
      %v158 = vrot.slane %v153, %v157
      %v160 = vadd.f32 %v151, %v158
      %v161 = vadd.f32 %v152, %v158
      %162 = vst.msk [vmem:[#allocation3] sm:$0xff] %vm96, %v160
      %163 = vst.msk [vmem:[#allocation3 + $0x8] sm:$0xff] %vm96, %v161
    $region33: #{_lambda_.21} parent=1 // pred_fallthru
      _
    // Predicated region
    $region34: #{_lambda_.21} parent=1 // pred_check
      _
    $region35: #{_lambda_.21} parent=1 // pred_check_branch
      %165 = sbr.rel (0) target = $region37
    $region36: #{_lambda_.21} parent=1 // pred_region
      %s167 = ssub.s32 256, 256
      %168 = vsyncadd [#allocation4], %s167
      %s169 = sshll.u32 [#allocation3], 4
      %s170 = int_to_ptr.vmem [resolvable:$true] %s169
      %175 = dma.vmem_to_hbm [thread:$0]  %s170, 256, %s6, [#allocation4], 128, 128, 8
    $region37: #{_lambda_.21} parent=1 // pred_fallthru
      _
    // Predicated region
    $region38: #{_lambda_.21} parent=1 // pred_check
      _
    $region39: #{_lambda_.21} parent=1 // pred_check_branch
      %177 = sbr.rel (0) target = $region41
    $region40: #{_lambda_.21} parent=1 // pred_region
      %178 = dma.done [#allocation4], 256
    $region41: #{_lambda_.21} parent=1 // pred_fallthru
      _
    %179 = vsyncpa [#allocation4], 1

// kernel: _lambda_.16
$region0: #{_lambda_.16}
  #allocation0 [shape = 'u32[]', space=smem, size = 0x4, offset = 0x4, fixed_abs, tag = 'smem constant byte address 0x4 - core index']
  #allocation1 [shape = 'u32[144,128]{1,0:T(1,128)}', space=vmem, size = 0x12000, scoped, tag = 'internal scratch']
  #allocation2 [shape = 'f32[16,32]{1,0:T(8,128)}', space=vmem, size = 0x2000, scoped, tag = 'scratch operand']
  %s0 = inlined_call_operand.vmem [shape: f32[16,64], index: 0, kind: input, shape index: {}]
  %s1 = inlined_call_operand.vmem [shape: f32[64,32], index: 1, kind: input, shape index: {}]
  %s2 = inlined_call_operand.vmem [shape: f32[1,32], index: 2, kind: input, shape index: {}]
  %s3 = inlined_call_operand.vmem [shape: f32[16,32], index: 3, kind: input, shape index: {}]
  %s4 = inlined_call_operand.vmem [shape: f32[1,32], index: 4, kind: input, shape index: {}]
  %s5 = inlined_call_operand.vmem [shape: f32[1,32], index: 5, kind: input, shape index: {}]
  %s6 = inlined_call_operand.vmem [shape: f32[16,32], index: 6, kind: output, shape index: {}]
  %s7 = sld [smem:[#allocation0]]
  $region42: #{_lambda_.16} parent=0
    _
  %s9 = ssub.s32 1, %s7
  %s10 = scalar_select 0, %s9, %s7
  // Predicated region
  $region2: #{_lambda_.16} parent=0 // pred_check
    _
  $region3: #{_lambda_.16} parent=0 // pred_check_branch
    %12 = sbr.rel (0) target = $region5
  $region4: #{_lambda_.16} parent=0 // pred_region
    _
  $region5: #{_lambda_.16} parent=0 // pred_fallthru
    _
  // Predicated region
  $region6: #{_lambda_.16} parent=0 // pred_check
    _
  $region7: #{_lambda_.16} parent=0 // pred_check_branch
    %14 = sbr.rel (0) target = $region9
  $region8: #{_lambda_.16} parent=0 // pred_region
    _
  $region9: #{_lambda_.16} parent=0 // pred_fallthru
    _
  // Predicated region
  $region10: #{_lambda_.16} parent=0 // pred_check
    _
  $region11: #{_lambda_.16} parent=0 // pred_check_branch
    %16 = sbr.rel (0) target = $region13
  $region12: #{_lambda_.16} parent=0 // pred_region
    _
  $region13: #{_lambda_.16} parent=0 // pred_fallthru
    _
  // Predicated region
  $region14: #{_lambda_.16} parent=0 // pred_check
    _
  $region15: #{_lambda_.16} parent=0 // pred_check_branch
    %18 = sbr.rel (0) target = $region17
  $region16: #{_lambda_.16} parent=0 // pred_region
    _
  $region17: #{_lambda_.16} parent=0 // pred_fallthru
    _
  // Predicated region
  $region18: #{_lambda_.16} parent=0 // pred_check
    _
  $region19: #{_lambda_.16} parent=0 // pred_check_branch
    %20 = sbr.rel (0) target = $region21
  $region20: #{_lambda_.16} parent=0 // pred_region
    _
  $region21: #{_lambda_.16} parent=0 // pred_fallthru
    _
  // Predicated region
  $region22: #{_lambda_.16} parent=0 // pred_check
    _
  $region23: #{_lambda_.16} parent=0 // pred_check_branch
    %22 = sbr.rel (0) target = $region25
  $region24: #{_lambda_.16} parent=0 // pred_region
    _
  $region25: #{_lambda_.16} parent=0 // pred_fallthru
    _
  %p24 = scmp.eq.s32.totalorder 0, 0
  // Predicated region
  $region26: #{_lambda_.16} parent=0 // pred_check
    %p25 = pneg %p24
  $region27: #{_lambda_.16} parent=0 // pred_check_branch
    %27 = sbr.rel (%p25) target = $region29
  $region28: #{_lambda_.16} parent=0 // pred_region
    %vm28 = vcmask 261120
    %29 = vst.msk [vmem:[#allocation2] sm:$0xff] %vm28, 0.0
    %30 = vst.msk [vmem:[#allocation2 + $0x8] sm:$0xff] %vm28, 0.0
  $region29: #{_lambda_.16} parent=0 // pred_fallthru
    _
  %v31 = vld [vmem:[#allocation2] sm:$0xff]
  %v32 = vld [vmem:[#allocation2 + $0x8] sm:$0xff]
  %v33 = vld [vmem:[%s0] sm:$0xff]
  %v34 = vld [vmem:[%s0 + $0x8] sm:$0xff]
  %v35 = vpack.c.bf16 %v34, %v33
  %v36 = vld [vmem:[%s1] sm:$0xff]
  %v37 = vld [vmem:[%s1 + $0x8] sm:$0xff]
  %v38 = vld [vmem:[%s1 + $0x10] sm:$0xff]
  %v39 = vld [vmem:[%s1 + $0x18] sm:$0xff]
  %v40 = vld [vmem:[%s1 + $0x20] sm:$0xff]
  %v41 = vld [vmem:[%s1 + $0x28] sm:$0xff]
  %v42 = vld [vmem:[%s1 + $0x30] sm:$0xff]
  %v43 = vld [vmem:[%s1 + $0x38] sm:$0xff]
  %v44 = vpack.c.bf16 %v37, %v36
  %v45 = vpack.c.bf16 %v39, %v38
  %v46 = vpack.c.bf16 %v41, %v40
  %v47 = vpack.c.bf16 %v43, %v42
  %vm48 = vcmask 523264
  %v50 = vsel %vm48, %v35, 0
  %52 = vmatprep.subr.bf16.mxu0 0
  %53 = vmatpush1.bf16.msra.mxu0 %v44
  %54 = vmatprep.subr.bf16.mxu0 0
  %55 = vmatpush1.bf16.msra.mxu0 %v45
  %56 = vmatprep.subr.bf16.mxu0 0
  %57 = vmatpush1.bf16.msra.mxu0 %v46
  %58 = vmatprep.subr.bf16.mxu0 0
  %59 = vmatpush1.bf16.msra.mxu0 %v47
  %60 = vmatprep.subr.bf16.mxu0 0
  %61 = vmatpush1.bf16.msra.mxu0 0
  %62 = vmatprep.subr.bf16.mxu0 0
  %63 = vmatpush1.bf16.msra.mxu0 0
  %64 = vmatprep.subr.bf16.mxu0 0
  %65 = vmatpush1.bf16.msra.mxu0 0
  %66 = vmatprep.subr.bf16.mxu0 0
  %67 = vmatpush1.bf16.msra.mxu0 0
  %68 = vmatprep.subr.bf16.mxu0 0
  %69 = vmatpush1.bf16.msra.mxu0 0
  %70 = vmatprep.subr.bf16.mxu0 0
  %71 = vmatpush1.bf16.msra.mxu0 0
  %72 = vmatprep.subr.bf16.mxu0 0
  %73 = vmatpush1.bf16.msra.mxu0 0
  %74 = vmatprep.subr.bf16.mxu0 0
  %75 = vmatpush1.bf16.msra.mxu0 0
  %76 = vmatprep.subr.bf16.mxu0 0
  %77 = vmatpush1.bf16.msra.mxu0 0
  %78 = vmatprep.subr.bf16.mxu0 0
  %79 = vmatpush1.bf16.msra.mxu0 0
  %80 = vmatprep.subr.bf16.mxu0 0
  %81 = vmatpush1.bf16.msra.mxu0 0
  %82 = vmatprep.subr.bf16.mxu0 0
  %83 = vmatpush1.bf16.msra.mxu0 0
  %84 = vmatprep.mubr.bf16.mxu0 0
  %85 = vmatmul.mubr.bf16.gmra.mrb[0].mxu0 %v50
  %v86 = vpop.f32.mrb[0].mxu0
  %v87 = vadd.f32 0.0, %v86
  %v88 = vpop.f32.mrb[0].mxu0
  %v89 = vpop.f32.mrb[0].mxu0
  %v90 = vadd.f32 0.0, %v89
  %v91 = vpop.f32.mrb[0].mxu0
  %92 = vdwg.mxu0
  %v93 = vadd.f32 %v31, %v87
  %v94 = vadd.f32 %v32, %v90
  %vm95 = vcmask 261120
  %96 = vst.msk [vmem:[#allocation2] sm:$0xff] %vm95, %v93
  %97 = vst.msk [vmem:[#allocation2 + $0x8] sm:$0xff] %vm95, %v94
  // Predicated region
  $region30: #{_lambda_.16} parent=0 // pred_check
    %p98 = pneg %p24
  $region31: #{_lambda_.16} parent=0 // pred_check_branch
    %100 = sbr.rel (%p98) target = $region33
  $region32: #{_lambda_.16} parent=0 // pred_region
    %v101 = vld [vmem:[#allocation2] sm:$0xff]
    %v102 = vld [vmem:[#allocation2 + $0x8] sm:$0xff]
    %v103 = vld [vmem:[%s2] sm:$0x1]
    %v105 = vlaneseq
    %v106 = vshrl.u32 %v105, 7
    %v107 = vsub.s32 0, %v106
    %v108 = vrot.slane %v103, %v107
    %v110 = vadd.f32 %v101, %v108
    %v111 = vadd.f32 %v102, %v108
    %v112 = vld [vmem:[%s3] sm:$0xff]
    %v113 = vld [vmem:[%s3 + $0x8] sm:$0xff]
    %v114 = vadd.f32 %v110, %v112
    %v115 = vadd.f32 %v111, %v113
    %v116 = vsel %vm95, %v114, 0.0
    %117 = vadd.xlane.f32.xlu0 %v116
    %v118 = vpop.xlane.xlu0 %117
    %v119 = vsel %vm95, %v115, 0.0
    %120 = vadd.xlane.f32.xlu0 %v119
    %v121 = vpop.xlane.xlu0 %120
    %v122 = vrcp.pop 32.0
    %v123 = vmul.f32 %v118, %v122
    %v124 = vmul.f32 %v121, %v122
    %v125 = vsub.f32 %v114, %v123
    %v126 = vsub.f32 %v115, %v124
    %v127 = vmul.f32 %v125, %v125
    %v128 = vmul.f32 %v126, %v126
    %v129 = vsel %vm95, %v127, 0.0
    %130 = vadd.xlane.f32.xlu0 %v129
    %v131 = vpop.xlane.xlu0 %130
    %v132 = vsel %vm95, %v128, 0.0
    %133 = vadd.xlane.f32.xlu0 %v132
    %v134 = vpop.xlane.xlu0 %133
    %v135 = vmul.f32 %v131, %v122
    %v136 = vmul.f32 %v134, %v122
    %v137 = vadd.f32 %v135, 1e-12
    %v138 = vadd.f32 %v136, 1e-12
    %v139 = vrsqrt.pop %v137
    %v140 = vrsqrt.pop %v138
    %v141 = vmul.f32 %v125, %v139
    %v142 = vmul.f32 %v126, %v140
    %v143 = vld [vmem:[%s4] sm:$0x1]
    %v145 = vlaneseq
    %v146 = vshrl.u32 %v145, 7
    %v147 = vsub.s32 0, %v146
    %v148 = vrot.slane %v143, %v147
    %v150 = vmul.f32 %v141, %v148
    %v151 = vmul.f32 %v142, %v148
    %v152 = vld [vmem:[%s5] sm:$0x1]
    %v154 = vlaneseq
    %v155 = vshrl.u32 %v154, 7
    %v156 = vsub.s32 0, %v155
    %v157 = vrot.slane %v152, %v156
    %v159 = vadd.f32 %v150, %v157
    %v160 = vadd.f32 %v151, %v157
    %161 = vst.msk [vmem:[%s6] sm:$0xff] %vm95, %v159
    %162 = vst.msk [vmem:[%s6 + $0x8] sm:$0xff] %vm95, %v160
  $region33: #{_lambda_.16} parent=0 // pred_fallthru
    _
  // Predicated region
  $region34: #{_lambda_.16} parent=0 // pred_check
    _
  $region35: #{_lambda_.16} parent=0 // pred_check_branch
    %164 = sbr.rel (0) target = $region37
  $region36: #{_lambda_.16} parent=0 // pred_region
    _
  $region37: #{_lambda_.16} parent=0 // pred_fallthru
    _
  // Predicated region
  $region38: #{_lambda_.16} parent=0 // pred_check
    _
  $region39: #{_lambda_.16} parent=0 // pred_check_branch
    %166 = sbr.rel (0) target = $region41
  $region40: #{_lambda_.16} parent=0 // pred_region
    _
  $region41: #{_lambda_.16} parent=0 // pred_fallthru
    _

</llo_original>
